<compile_context>
chip_gen: v7x
topology: tpu7x:2x2x1
jax: 0.10.0
libtpu: 0.0.40
codegen_flags: <defaults>
</compile_context>

<pallas_src>
import functools

import jax
import jax.numpy as jnp
from jax.experimental import pallas as pl
from jax.experimental.pallas import tpu as pltpu

LANE = 128      # vreg lane width  (batch axis in the feature-major layout)
SUBLANE = 8     # vreg sublane width (feature axes)


def _round_up(x, m):
    return (x + m - 1) // m * m


def _pad2d(a, rows, cols):
    pr, pc = rows - a.shape[0], cols - a.shape[1]
    return jnp.pad(a, ((0, pr), (0, pc))) if (pr or pc) else a


# --------------------------------------------------------------------------- #
# Kernel
# --------------------------------------------------------------------------- #
def _actor_kernel(x_ref, w1_ref, b1_ref, w2_ref, b2_ref, w3_ref, b3_ref,
                  o_ref, *, act_limit):
    """Fused MLP actor tile, feature-major.

    x_ref : [obs_p, tb]   (obs features on sublanes, batch on lanes)
    wN_ref: [out_p, in_p] (transposed nn.Linear weight, zero-padded)
    bN_ref: [out_p, 1]    (bias column, broadcast over the lane/batch axis)
    o_ref : [act_p, tb]
    """
    hp = jax.lax.Precision.HIGHEST
    x = x_ref[...]

    h1 = jnp.dot(w1_ref[...], x, precision=hp,
                 preferred_element_type=jnp.float32) + b1_ref[...]
    h1 = jnp.maximum(h1, 0.0)                                   # ReLU

    h2 = jnp.dot(w2_ref[...], h1, precision=hp,
                 preferred_element_type=jnp.float32) + b2_ref[...]
    h2 = jnp.maximum(h2, 0.0)                                   # ReLU

    z = jnp.dot(w3_ref[...], h2, precision=hp,
                preferred_element_type=jnp.float32) + b3_ref[...]
    o_ref[...] = (act_limit * jnp.tanh(z)).astype(o_ref.dtype)  # Tanh * act_limit


# --------------------------------------------------------------------------- #
# Wrapper
# --------------------------------------------------------------------------- #
def prepare_actor_params(params):
    """One-time (off the per-call path): transpose weights to [out, in] and
    zero-pad every feature dim to the 8-row sublane width.  Zero padding is
    semantics-preserving: relu(0)=0, tanh(0)=0, padded rows are sliced off."""
    w1, b1, w2, b2, w3, b3 = params
    obs_dim, h1 = w1.shape
    h2, act_dim = w2.shape[1], w3.shape[1]
    obs_p = _round_up(obs_dim, SUBLANE)
    h1_p = _round_up(h1, SUBLANE)
    h2_p = _round_up(h2, SUBLANE)
    act_p = _round_up(act_dim, SUBLANE)
    return {
        "w1": _pad2d(w1.T, h1_p, obs_p), "b1": _pad2d(b1.reshape(-1, 1), h1_p, 1),
        "w2": _pad2d(w2.T, h2_p, h1_p),  "b2": _pad2d(b2.reshape(-1, 1), h2_p, 1),
        "w3": _pad2d(w3.T, act_p, h2_p), "b3": _pad2d(b3.reshape(-1, 1), act_p, 1),
        "obs_dim": obs_dim, "act_dim": act_dim,
    }


def _pick_tb(batch, block_batch):
    """Batch tile (lane axis): multiple of 128, >=2 grid steps when possible
    (so both v7x TensorCores get work), last-tile padding waste ~<=10%."""
    batch = int(batch)
    batch_l = _round_up(max(batch, 1), LANE)
    max_tb = min(_round_up(max(int(block_batch), 1), LANE), batch_l)
    if batch_l > LANE:                       # guarantee >= 2 grid steps (megacore)
        max_tb = min(max_tb, _round_up(pl.cdiv(batch_l, 2), LANE))
    candidates = list(range(LANE, max_tb + 1, LANE))
    pad = lambda tb: _round_up(batch, tb) - batch
    min_pad = min(pad(tb) for tb in candidates)
    allowed = max(min_pad, int(0.1 * batch))
    # Largest tile whose padding waste is acceptable (amortizes ~0.35us/step).
    return max(tb for tb in candidates if pad(tb) <= allowed)


def bugged_mlp_actor_forward(obs, prep, act_limit, *, block_batch=1024):
    """obs: [batch, obs_dim] float32.  prep: output of prepare_actor_params."""
    batch, obs_dim = obs.shape
    assert obs_dim == prep["obs_dim"]
    w1, b1, w2, b2, w3, b3 = (prep[k] for k in ("w1", "b1", "w2", "b2", "w3", "b3"))
    h1_p, obs_p = w1.shape
    h2_p = w2.shape[0]
    act_p = w3.shape[0]
    act_dim = prep["act_dim"]

    tb = _pick_tb(batch, block_batch)
    batch_p = _round_up(batch, tb)
    grid = (batch_p // tb,)

    # Feature-major obs: [obs_p, batch_p]; padded batch columns are zeros and
    # only produce output columns that are sliced off afterwards.
    obs_fm = _pad2d(obs.T, obs_p, batch_p)

    # VMEM budget: double-buffered obs/out tiles + resident (double-buffered)
    # weights/biases + h1/h2 intermediates.  2x headroom, cap 48 MiB (< v7x's
    # 64 MiB physical), no large floor — the real need is a few MiB at most.
    vmem_need = 4 * (2 * tb * (obs_p + act_p)
                     + 2 * (h1_p * obs_p + h2_p * h1_p + act_p * h2_p
                            + h1_p + h2_p + act_p)
                     + tb * (h1_p + h2_p))
    vmem_limit = int(min(max(2 * vmem_need, 16 * 1024 * 1024), 48 * 1024 * 1024))

    resident = lambda a: pl.BlockSpec(a.shape, lambda i: (0, 0))
    kernel = functools.partial(_actor_kernel, act_limit=float(act_limit))

    out_fm = pl.pallas_call(
        kernel,
        out_shape=jax.ShapeDtypeStruct((act_p, batch_p), jnp.float32),
        grid=grid,
        in_specs=[
            pl.BlockSpec((obs_p, tb), lambda i: (0, i)),   # obs: tiled over batch (lanes)
            resident(w1), resident(b1),                    # weights/biases: VMEM-resident
            resident(w2), resident(b2),
            resident(w3), resident(b3),
        ],
        out_specs=pl.BlockSpec((act_p, tb), lambda i: (0, i)),   # 8-sublane, lane-dense store
        compiler_params=pltpu.CompilerParams(
            dimension_semantics=("parallel",),             # megacore split on v7x
            vmem_limit_bytes=vmem_limit,
        ),
    )(obs_fm, w1, b1, w2, b2, w3, b3)

    return out_fm[:act_dim, :batch].T


# --------------------------------------------------------------------------- #
# Reference + test
# --------------------------------------------------------------------------- #
def init_params(key, obs_dim, hidden_sizes, act_dim):
    """Deterministic synthetic init. Weights stored as [in, out], biases [1, out]."""
    sizes = [obs_dim] + list(hidden_sizes) + [act_dim]
    params = []
    for j in range(len(sizes) - 1):
        key, kw, kb = jax.random.split(key, 3)
        bound = 1.0 / jnp.sqrt(sizes[j])     # mimics PyTorch Linear default init range
        w = jax.random.uniform(kw, (sizes[j], sizes[j + 1]), jnp.float32, -bound, bound)
        b = jax.random.uniform(kb, (1, sizes[j + 1]), jnp.float32, -bound, bound)
        params += [w, b]
    return tuple(params)


def reference_forward(obs, params, act_limit):
    w1, b1, w2, b2, w3, b3 = params
    hp = jax.lax.Precision.HIGHEST
    h1 = jnp.maximum(jnp.dot(obs, w1, precision=hp) + b1, 0.0)
    h2 = jnp.maximum(jnp.dot(h1, w2, precision=hp) + b2, 0.0)
    return act_limit * jnp.tanh(jnp.dot(h2, w3, precision=hp) + b3)


if __name__ == "__main__":
    obs_dim, act_dim = 8, 4
    hidden_sizes = (32, 32)
    act_limit = 2.0

    key = jax.random.PRNGKey(0)
    key, kobs = jax.random.split(key)
    params = init_params(key, obs_dim, hidden_sizes, act_dim)
    prep = prepare_actor_params(params)      # one-time transpose + pad

    # Small case: batch=2 -> single 128-lane tile, grid=(1,).
    obs = jax.random.normal(kobs, (2, obs_dim), jnp.float32)
    out = jax.block_until_ready(bugged_mlp_actor_forward(obs, prep, act_limit))
    ref = reference_forward(obs, params, act_limit)
    assert out.shape == (2, act_dim)
    assert jnp.allclose(out, ref, atol=1e-5, rtol=1e-5), "mismatch vs JAX reference"

    # Multi-tile case: batch=300, block_batch=256 -> tb=128, grid=(3,), exercises
    # the batch grid, remainder padding and the megacore-friendly >=2-step rule.
    key, kobs2 = jax.random.split(key)
    obs2 = jax.random.normal(kobs2, (300, obs_dim), jnp.float32)
    out2 = jax.block_until_ready(
        bugged_mlp_actor_forward(obs2, prep, act_limit, block_batch=256))
    ref2 = reference_forward(obs2, params, act_limit)
    assert out2.shape == (300, act_dim)
    assert jnp.allclose(out2, ref2, atol=1e-5, rtol=1e-5), "mismatch vs JAX reference (gridded)"

    print("KERNEL_OK")
</pallas_src>

<mosaic_0001>
module attributes {stable_mosaic.version = 11 : i64} {
  func.func @_actor_kernel(%arg0: i32, %arg1: memref<8x128xf32, #tpu.memory_space<vmem>>, %arg2: memref<32x8xf32, #tpu.memory_space<vmem>>, %arg3: memref<32x1xf32, #tpu.memory_space<vmem>>, %arg4: memref<32x32xf32, #tpu.memory_space<vmem>>, %arg5: memref<32x1xf32, #tpu.memory_space<vmem>>, %arg6: memref<8x32xf32, #tpu.memory_space<vmem>>, %arg7: memref<8x1xf32, #tpu.memory_space<vmem>>, %arg8: memref<8x128xf32, #tpu.memory_space<vmem>>) attributes {dimension_semantics = [#tpu.dimension_semantics<parallel>], iteration_bounds = array<i64: 1>, scalar_prefetch = 0 : i64, scratch_operands = 0 : i64, tpu.core_type = #tpu.core_type<tc>, window_params = [{transform_indices = @transform_0, window_bounds = array<i64: 8, 128>}, {pipeline_mode = #tpu.pipeline_mode<synchronous>, transform_indices = @transform_1, window_bounds = array<i64: 32, 8>}, {pipeline_mode = #tpu.pipeline_mode<synchronous>, transform_indices = @transform_2, window_bounds = array<i64: 32, 1>}, {pipeline_mode = #tpu.pipeline_mode<synchronous>, transform_indices = @transform_3, window_bounds = array<i64: 32, 32>}, {pipeline_mode = #tpu.pipeline_mode<synchronous>, transform_indices = @transform_4, window_bounds = array<i64: 32, 1>}, {pipeline_mode = #tpu.pipeline_mode<synchronous>, transform_indices = @transform_5, window_bounds = array<i64: 8, 32>}, {pipeline_mode = #tpu.pipeline_mode<synchronous>, transform_indices = @transform_6, window_bounds = array<i64: 8, 1>}, {transform_indices = @transform_7, window_bounds = array<i64: 8, 128>}]} {
    %c0 = arith.constant 0 : index
    %c0_0 = arith.constant 0 : index
    %0 = vector.load %arg1[%c0, %c0_0] : memref<8x128xf32, #tpu.memory_space<vmem>>, vector<8x128xf32>
    %c0_1 = arith.constant 0 : index
    %c0_2 = arith.constant 0 : index
    %1 = vector.load %arg2[%c0_1, %c0_2] : memref<32x8xf32, #tpu.memory_space<vmem>>, vector<32x8xf32>
    %cst = arith.constant dense<0.000000e+00> : vector<32x128xf32>
    %2 = tpu.matmul %1, %0, %cst {dimension_numbers = #tpu.dot_dimension_numbers<[1], [0], [0], [1], [0, 0, 1, 1], [], []>, precision = #tpu.contract_precision<fp32>} : vector<32x8xf32>, vector<8x128xf32>, vector<32x128xf32> -> vector<32x128xf32>
    %c0_3 = arith.constant 0 : index
    %c0_4 = arith.constant 0 : index
    %3 = vector.load %arg3[%c0_3, %c0_4] : memref<32x1xf32, #tpu.memory_space<vmem>>, vector<32x1xf32>
    %4 = vector.broadcast %3 : vector<32x1xf32> to vector<32x128xf32>
    %5 = arith.addf %2, %4 : vector<32x128xf32>
    %cst_5 = arith.constant 0.000000e+00 : f32
    %6 = vector.broadcast %cst_5 : f32 to vector<32x128xf32>
    %7 = arith.maximumf %5, %6 : vector<32x128xf32>
    %c0_6 = arith.constant 0 : index
    %c0_7 = arith.constant 0 : index
    %8 = vector.load %arg4[%c0_6, %c0_7] : memref<32x32xf32, #tpu.memory_space<vmem>>, vector<32x32xf32>
    %cst_8 = arith.constant dense<0.000000e+00> : vector<32x128xf32>
    %9 = tpu.matmul %8, %7, %cst_8 {dimension_numbers = #tpu.dot_dimension_numbers<[1], [0], [0], [1], [0, 0, 1, 1], [], []>, precision = #tpu.contract_precision<fp32>} : vector<32x32xf32>, vector<32x128xf32>, vector<32x128xf32> -> vector<32x128xf32>
    %c0_9 = arith.constant 0 : index
    %c0_10 = arith.constant 0 : index
    %10 = vector.load %arg5[%c0_9, %c0_10] : memref<32x1xf32, #tpu.memory_space<vmem>>, vector<32x1xf32>
    %11 = vector.broadcast %10 : vector<32x1xf32> to vector<32x128xf32>
    %12 = arith.addf %9, %11 : vector<32x128xf32>
    %cst_11 = arith.constant 0.000000e+00 : f32
    %13 = vector.broadcast %cst_11 : f32 to vector<32x128xf32>
    %14 = arith.maximumf %12, %13 : vector<32x128xf32>
    %c0_12 = arith.constant 0 : index
    %c0_13 = arith.constant 0 : index
    %15 = vector.load %arg6[%c0_12, %c0_13] : memref<8x32xf32, #tpu.memory_space<vmem>>, vector<8x32xf32>
    %cst_14 = arith.constant dense<0.000000e+00> : vector<8x128xf32>
    %16 = tpu.matmul %15, %14, %cst_14 {dimension_numbers = #tpu.dot_dimension_numbers<[1], [0], [0], [1], [0, 0, 1, 1], [], []>, precision = #tpu.contract_precision<fp32>} : vector<8x32xf32>, vector<32x128xf32>, vector<8x128xf32> -> vector<8x128xf32>
    %c0_15 = arith.constant 0 : index
    %c0_16 = arith.constant 0 : index
    %17 = vector.load %arg7[%c0_15, %c0_16] : memref<8x1xf32, #tpu.memory_space<vmem>>, vector<8x1xf32>
    %18 = vector.broadcast %17 : vector<8x1xf32> to vector<8x128xf32>
    %19 = arith.addf %16, %18 : vector<8x128xf32>
    %20 = math.tanh %19 : vector<8x128xf32>
    %cst_17 = arith.constant 2.000000e+00 : f32
    %21 = vector.broadcast %cst_17 : f32 to vector<8x128xf32>
    %22 = arith.mulf %21, %20 : vector<8x128xf32>
    %c0_18 = arith.constant 0 : index
    %c0_19 = arith.constant 0 : index
    %23 = vector.load %arg8[%c0_18, %c0_19] : memref<8x128xf32, #tpu.memory_space<vmem>>, vector<8x128xf32>
    tpu.vector_store %arg8[%c0_18, %c0_19], %22 {strides = array<i32>} : memref<8x128xf32, #tpu.memory_space<vmem>>, vector<8x128xf32>,
    return
  }
  func.func @transform_0(%arg0: i32) -> (i32, i32) {
    %c0_i32 = arith.constant 0 : i32
    %c0_i32_0 = arith.constant 0 : i32
    return %c0_i32, %arg0 : i32, i32
  }
  func.func @transform_1(%arg0: i32) -> (i32, i32) {
    %c0_i32 = arith.constant 0 : i32
    %c0_i32_0 = arith.constant 0 : i32
    %c0_i32_1 = arith.constant 0 : i32
    return %c0_i32, %c0_i32_0 : i32, i32
  }
  func.func @transform_2(%arg0: i32) -> (i32, i32) {
    %c0_i32 = arith.constant 0 : i32
    %c0_i32_0 = arith.constant 0 : i32
    %c0_i32_1 = arith.constant 0 : i32
    return %c0_i32, %c0_i32_0 : i32, i32
  }
  func.func @transform_3(%arg0: i32) -> (i32, i32) {
    %c0_i32 = arith.constant 0 : i32
    %c0_i32_0 = arith.constant 0 : i32
    %c0_i32_1 = arith.constant 0 : i32
    return %c0_i32, %c0_i32_0 : i32, i32
  }
  func.func @transform_4(%arg0: i32) -> (i32, i32) {
    %c0_i32 = arith.constant 0 : i32
    %c0_i32_0 = arith.constant 0 : i32
    %c0_i32_1 = arith.constant 0 : i32
    return %c0_i32, %c0_i32_0 : i32, i32
  }
  func.func @transform_5(%arg0: i32) -> (i32, i32) {
    %c0_i32 = arith.constant 0 : i32
    %c0_i32_0 = arith.constant 0 : i32
    %c0_i32_1 = arith.constant 0 : i32
    return %c0_i32, %c0_i32_0 : i32, i32
  }
  func.func @transform_6(%arg0: i32) -> (i32, i32) {
    %c0_i32 = arith.constant 0 : i32
    %c0_i32_0 = arith.constant 0 : i32
    %c0_i32_1 = arith.constant 0 : i32
    return %c0_i32, %c0_i32_0 : i32, i32
  }
  func.func @transform_7(%arg0: i32) -> (i32, i32) {
    %c0_i32 = arith.constant 0 : i32
    %c0_i32_0 = arith.constant 0 : i32
    return %c0_i32, %arg0 : i32, i32
  }
}

</mosaic_0001>

<llo_original>
// kernel: tpu_custom_call.1
$region0: #{tpu_custom_call.1}
  #allocation0 [shape = 'u32[]', space=smem, size = 0x4, offset = 0x4, fixed_abs, tag = 'smem constant byte address 0x4 - core index']
  #allocation1 [shape = 'u32[144,128]{1,0:T(1,128)}', space=vmem, size = 0x12000, scoped, tag = 'internal scratch']
  %s0 = inlined_call_operand.vmem [shape: f32[8,128], index: 0, kind: input, shape index: {}]
  %s1 = inlined_call_operand.vmem [shape: f32[32,8], index: 1, kind: input, shape index: {}]
  %s2 = inlined_call_operand.vmem [shape: f32[32,1], index: 2, kind: input, shape index: {}]
  %s3 = inlined_call_operand.vmem [shape: f32[32,32], index: 3, kind: input, shape index: {}]
  %s4 = inlined_call_operand.vmem [shape: f32[32,1], index: 4, kind: input, shape index: {}]
  %s5 = inlined_call_operand.vmem [shape: f32[8,32], index: 5, kind: input, shape index: {}]
  %s6 = inlined_call_operand.vmem [shape: f32[8,1], index: 6, kind: input, shape index: {}]
  %s7 = inlined_call_operand.hbm [shape: f32[8,128], index: 7, kind: output, shape index: {}]
  %s8 = sld [smem:[#allocation0]]
  $region38: #{tpu_custom_call.1} parent=0
    _
  %s10 = ssub.s32 1, %s8
  %s11 = scalar_select 0, %s10, %s8
  $region1: #{tpu_custom_call.1} parent=0
    #allocation2 [shape = 'u8[4096]{0}', space=vmem, size = 0x1000, scoped, tag = 'output window, operand 0, single buffered']
    #allocation3 [shape = 's32[1]{0}', space=sflag, size = 0x4, scoped, tag = 'scoped memory for tpu_custom_call.1']
    %12 = vsyncpa [#allocation3], 0
    // Predicated region
    $region2: #{tpu_custom_call.1} parent=1 // pred_check
      _
    $region3: #{tpu_custom_call.1} parent=1 // pred_check_branch
      %14 = sbr.rel (0) target = $region5
    $region4: #{tpu_custom_call.1} parent=1 // pred_region
      _
    $region5: #{tpu_custom_call.1} parent=1 // pred_fallthru
      _
    // Predicated region
    $region6: #{tpu_custom_call.1} parent=1 // pred_check
      _
    $region7: #{tpu_custom_call.1} parent=1 // pred_check_branch
      %16 = sbr.rel (0) target = $region9
    $region8: #{tpu_custom_call.1} parent=1 // pred_region
      _
    $region9: #{tpu_custom_call.1} parent=1 // pred_fallthru
      _
    // Predicated region
    $region10: #{tpu_custom_call.1} parent=1 // pred_check
      _
    $region11: #{tpu_custom_call.1} parent=1 // pred_check_branch
      %18 = sbr.rel (0) target = $region13
    $region12: #{tpu_custom_call.1} parent=1 // pred_region
      _
    $region13: #{tpu_custom_call.1} parent=1 // pred_fallthru
      _
    // Predicated region
    $region14: #{tpu_custom_call.1} parent=1 // pred_check
      _
    $region15: #{tpu_custom_call.1} parent=1 // pred_check_branch
      %20 = sbr.rel (0) target = $region17
    $region16: #{tpu_custom_call.1} parent=1 // pred_region
      _
    $region17: #{tpu_custom_call.1} parent=1 // pred_fallthru
      _
    // Predicated region
    $region18: #{tpu_custom_call.1} parent=1 // pred_check
      _
    $region19: #{tpu_custom_call.1} parent=1 // pred_check_branch
      %22 = sbr.rel (0) target = $region21
    $region20: #{tpu_custom_call.1} parent=1 // pred_region
      _
    $region21: #{tpu_custom_call.1} parent=1 // pred_fallthru
      _
    // Predicated region
    $region22: #{tpu_custom_call.1} parent=1 // pred_check
      _
    $region23: #{tpu_custom_call.1} parent=1 // pred_check_branch
      %24 = sbr.rel (0) target = $region25
    $region24: #{tpu_custom_call.1} parent=1 // pred_region
      _
    $region25: #{tpu_custom_call.1} parent=1 // pred_fallthru
      _
    // Predicated region
    $region26: #{tpu_custom_call.1} parent=1 // pred_check
      _
    $region27: #{tpu_custom_call.1} parent=1 // pred_check_branch
      %26 = sbr.rel (0) target = $region29
    $region28: #{tpu_custom_call.1} parent=1 // pred_region
      _
    $region29: #{tpu_custom_call.1} parent=1 // pred_fallthru
      _
    %v27 = vld [vmem:[%s0] sm:$0xff]
    %v28 = vld [vmem:[%s1] sm:$0xff]
    %v29 = vld [vmem:[%s1 + $0x8] sm:$0xff]
    %v30 = vld [vmem:[%s1 + $0x10] sm:$0xff]
    %v31 = vld [vmem:[%s1 + $0x18] sm:$0xff]
    %v32 = vld [vmem:[%s2] sm:$0xff]
    %v33 = vld [vmem:[%s2 + $0x8] sm:$0xff]
    %v34 = vld [vmem:[%s2 + $0x10] sm:$0xff]
    %v35 = vld [vmem:[%s2 + $0x18] sm:$0xff]
    %37 = vset.pattern.permute.xlu0 0
    %38 = vperm.xlu0 %37, %v32
    %v39 = vpop.permute.xlu0 %38
    %42 = vset.pattern.permute.xlu0 0
    %43 = vperm.xlu0 %42, %v33
    %v44 = vpop.permute.xlu0 %43
    %47 = vset.pattern.permute.xlu0 0
    %48 = vperm.xlu0 %47, %v34
    %v49 = vpop.permute.xlu0 %48
    %52 = vset.pattern.permute.xlu0 0
    %53 = vperm.xlu0 %52, %v35
    %v54 = vpop.permute.xlu0 %53
    %vm56 = vcmask 64512
    %v58 = vsel %vm56, %v28, 0
    %v61 = vsel %vm56, %v29, 0
    %v64 = vsel %vm56, %v30, 0
    %v67 = vsel %vm56, %v31, 0
    %69 = vmatprep.subr.mxu0 0.0
    %v70 = vand.u32 %v27, 4294901760
    %71 = vmatpush1.msra.mxu0 %v70
    %72 = vmatprep.subr.mxu0 0.0
    %73 = vmatpush1.msra.mxu0 0.0
    %74 = vmatprep.subr.mxu0 0.0
    %75 = vmatpush1.msra.mxu0 0.0
    %76 = vmatprep.subr.mxu0 0.0
    %77 = vmatpush1.msra.mxu0 0.0
    %78 = vmatprep.subr.mxu0 0.0
    %79 = vmatpush1.msra.mxu0 0.0
    %80 = vmatprep.subr.mxu0 0.0
    %81 = vmatpush1.msra.mxu0 0.0
    %82 = vmatprep.subr.mxu0 0.0
    %83 = vmatpush1.msra.mxu0 0.0
    %84 = vmatprep.subr.mxu0 0.0
    %85 = vmatpush1.msra.mxu0 0.0
    %86 = vmatprep.subr.mxu0 0.0
    %87 = vmatpush1.msra.mxu0 0.0
    %88 = vmatprep.subr.mxu0 0.0
    %89 = vmatpush1.msra.mxu0 0.0
    %90 = vmatprep.subr.mxu0 0.0
    %91 = vmatpush1.msra.mxu0 0.0
    %92 = vmatprep.subr.mxu0 0.0
    %93 = vmatpush1.msra.mxu0 0.0
    %94 = vmatprep.subr.mxu0 0.0
    %95 = vmatpush1.msra.mxu0 0.0
    %96 = vmatprep.subr.mxu0 0.0
    %97 = vmatpush1.msra.mxu0 0.0
    %98 = vmatprep.subr.mxu0 0.0
    %99 = vmatpush1.msra.mxu0 0.0
    %100 = vmatprep.subr.mxu0 0.0
    %101 = vmatpush1.msra.mxu0 0.0
    %102 = vmatprep.subr.mxu0 0.0
    %103 = vmatpush1.msra.mxu0 0.0
    %104 = vmatprep.subr.mxu0 0.0
    %105 = vmatpush1.msra.mxu0 0.0
    %106 = vmatprep.subr.mxu0 0.0
    %107 = vmatpush1.msra.mxu0 0.0
    %108 = vmatprep.subr.mxu0 0.0
    %109 = vmatpush1.msra.mxu0 0.0
    %110 = vmatprep.subr.mxu0 0.0
    %111 = vmatpush1.msra.mxu0 0.0
    %112 = vmatprep.subr.mxu0 0.0
    %113 = vmatpush1.msra.mxu0 0.0
    %114 = vmatprep.subr.mxu0 0.0
    %115 = vmatpush1.msra.mxu0 0.0
    %116 = vmatprep.subr.mxu0 0.0
    %117 = vmatpush1.msra.mxu0 0.0
    %118 = vmatprep.subr.mxu0 0.0
    %119 = vmatpush1.msra.mxu0 0.0
    %120 = vmatprep.subr.mxu0 0.0
    %121 = vmatpush1.msra.mxu0 0.0
    %122 = vmatprep.subr.mxu0 0.0
    %123 = vmatpush1.msra.mxu0 0.0
    %124 = vmatprep.subr.mxu0 0.0
    %125 = vmatpush1.msra.mxu0 0.0
    %126 = vmatprep.subr.mxu0 0.0
    %127 = vmatpush1.msra.mxu0 0.0
    %128 = vmatprep.subr.mxu0 0.0
    %129 = vmatpush1.msra.mxu0 0.0
    %130 = vmatprep.subr.mxu0 0.0
    %131 = vmatpush1.msra.mxu0 0.0
    %132 = vmatprep.subr.mxu0 0.0
    %133 = vmatpush1.msra.mxu0 0.0
    %134 = vmatprep.mubr.f32.mxu0 0.0
    %v135 = vand.u32 %v58, 4294901760
    %v136 = vsub.f32 %v58, %v135
    %v137 = vand.u32 %v136, 4294901760
    %v138 = vsub.f32 %v136, %v137
    %v139 = vand.u32 %v138, 4294901760
    %140 = vmatmul.mubr.f32.gmra.mrb[0].mxu0 %v139
    %v141 = vpop.f32.mrb[0].mxu0
    %v142 = vadd.f32 %v39, %v141
    %v143 = vpop.f32.mrb[0].mxu0
    %144 = vmatprep.mubr.f32.mxu0 0.0
    %v145 = vand.u32 %v61, 4294901760
    %v146 = vsub.f32 %v61, %v145
    %v147 = vand.u32 %v146, 4294901760
    %v148 = vsub.f32 %v146, %v147
    %v149 = vand.u32 %v148, 4294901760
    %150 = vmatmul.mubr.f32.gmra.mrb[0].mxu0 %v149
    %v151 = vpop.f32.mrb[0].mxu0
    %v152 = vadd.f32 %v44, %v151
    %v153 = vpop.f32.mrb[0].mxu0
    %154 = vmatprep.mubr.f32.mxu0 0.0
    %v155 = vand.u32 %v64, 4294901760
    %v156 = vsub.f32 %v64, %v155
    %v157 = vand.u32 %v156, 4294901760
    %v158 = vsub.f32 %v156, %v157
    %v159 = vand.u32 %v158, 4294901760
    %160 = vmatmul.mubr.f32.gmra.mrb[0].mxu0 %v159
    %v161 = vpop.f32.mrb[0].mxu0
    %v162 = vadd.f32 %v49, %v161
    %v163 = vpop.f32.mrb[0].mxu0
    %164 = vmatprep.mubr.f32.mxu0 0.0
    %v165 = vand.u32 %v67, 4294901760
    %v166 = vsub.f32 %v67, %v165
    %v167 = vand.u32 %v166, 4294901760
    %v168 = vsub.f32 %v166, %v167
    %v169 = vand.u32 %v168, 4294901760
    %170 = vmatmul.mubr.f32.gmra.mrb[0].mxu0 %v169
    %v171 = vpop.f32.mrb[0].mxu0
    %v172 = vadd.f32 %v54, %v171
    %v173 = vpop.f32.mrb[0].mxu0
    %174 = vdwg.mxu0
    %175 = vmatprep.subr.mxu0 0.0
    %v176 = vand.u32 %v27, 4294901760
    %v177 = vsub.f32 %v27, %v176
    %v178 = vand.u32 %v177, 4294901760
    %v179 = vsub.f32 %v177, %v178
    %v180 = vand.u32 %v179, 4294901760
    %181 = vmatpush1.msra.mxu0 %v180
    %182 = vmatprep.subr.mxu0 0.0
    %183 = vmatpush1.msra.mxu0 0.0
    %184 = vmatprep.subr.mxu0 0.0
    %185 = vmatpush1.msra.mxu0 0.0
    %186 = vmatprep.subr.mxu0 0.0
    %187 = vmatpush1.msra.mxu0 0.0
    %188 = vmatprep.subr.mxu0 0.0
    %189 = vmatpush1.msra.mxu0 0.0
    %190 = vmatprep.subr.mxu0 0.0
    %191 = vmatpush1.msra.mxu0 0.0
    %192 = vmatprep.subr.mxu0 0.0
    %193 = vmatpush1.msra.mxu0 0.0
    %194 = vmatprep.subr.mxu0 0.0
    %195 = vmatpush1.msra.mxu0 0.0
    %196 = vmatprep.subr.mxu0 0.0
    %197 = vmatpush1.msra.mxu0 0.0
    %198 = vmatprep.subr.mxu0 0.0
    %199 = vmatpush1.msra.mxu0 0.0
    %200 = vmatprep.subr.mxu0 0.0
    %201 = vmatpush1.msra.mxu0 0.0
    %202 = vmatprep.subr.mxu0 0.0
    %203 = vmatpush1.msra.mxu0 0.0
    %204 = vmatprep.subr.mxu0 0.0
    %205 = vmatpush1.msra.mxu0 0.0
    %206 = vmatprep.subr.mxu0 0.0
    %207 = vmatpush1.msra.mxu0 0.0
    %208 = vmatprep.subr.mxu0 0.0
    %209 = vmatpush1.msra.mxu0 0.0
    %210 = vmatprep.subr.mxu0 0.0
    %211 = vmatpush1.msra.mxu0 0.0
    %212 = vmatprep.subr.mxu0 0.0
    %213 = vmatpush1.msra.mxu0 0.0
    %214 = vmatprep.subr.mxu0 0.0
    %215 = vmatpush1.msra.mxu0 0.0
    %216 = vmatprep.subr.mxu0 0.0
    %217 = vmatpush1.msra.mxu0 0.0
    %218 = vmatprep.subr.mxu0 0.0
    %219 = vmatpush1.msra.mxu0 0.0
    %220 = vmatprep.subr.mxu0 0.0
    %221 = vmatpush1.msra.mxu0 0.0
    %222 = vmatprep.subr.mxu0 0.0
    %223 = vmatpush1.msra.mxu0 0.0
    %224 = vmatprep.subr.mxu0 0.0
    %225 = vmatpush1.msra.mxu0 0.0
    %226 = vmatprep.subr.mxu0 0.0
    %227 = vmatpush1.msra.mxu0 0.0
    %228 = vmatprep.subr.mxu0 0.0
    %229 = vmatpush1.msra.mxu0 0.0
    %230 = vmatprep.subr.mxu0 0.0
    %231 = vmatpush1.msra.mxu0 0.0
    %232 = vmatprep.subr.mxu0 0.0
    %233 = vmatpush1.msra.mxu0 0.0
    %234 = vmatprep.subr.mxu0 0.0
    %235 = vmatpush1.msra.mxu0 0.0
    %236 = vmatprep.subr.mxu0 0.0
    %237 = vmatpush1.msra.mxu0 0.0
    %238 = vmatprep.subr.mxu0 0.0
    %239 = vmatpush1.msra.mxu0 0.0
    %240 = vmatprep.subr.mxu0 0.0
    %241 = vmatpush1.msra.mxu0 0.0
    %242 = vmatprep.subr.mxu0 0.0
    %243 = vmatpush1.msra.mxu0 0.0
    %244 = vmatprep.mubr.f32.mxu0 0.0
    %v245 = vand.u32 %v58, 4294901760
    %246 = vmatmul.mubr.f32.gmra.mrb[0].mxu0 %v245
    %v247 = vpop.f32.mrb[0].mxu0
    %v248 = vadd.f32 %v142, %v247
    %v249 = vpop.f32.mrb[0].mxu0
    %250 = vmatprep.mubr.f32.mxu0 0.0
    %v251 = vand.u32 %v61, 4294901760
    %252 = vmatmul.mubr.f32.gmra.mrb[0].mxu0 %v251
    %v253 = vpop.f32.mrb[0].mxu0
    %v254 = vadd.f32 %v152, %v253
    %v255 = vpop.f32.mrb[0].mxu0
    %256 = vmatprep.mubr.f32.mxu0 0.0
    %v257 = vand.u32 %v64, 4294901760
    %258 = vmatmul.mubr.f32.gmra.mrb[0].mxu0 %v257
    %v259 = vpop.f32.mrb[0].mxu0
    %v260 = vadd.f32 %v162, %v259
    %v261 = vpop.f32.mrb[0].mxu0
    %262 = vmatprep.mubr.f32.mxu0 0.0
    %v263 = vand.u32 %v67, 4294901760
    %264 = vmatmul.mubr.f32.gmra.mrb[0].mxu0 %v263
    %v265 = vpop.f32.mrb[0].mxu0
    %v266 = vadd.f32 %v172, %v265
    %v267 = vpop.f32.mrb[0].mxu0
    %268 = vdwg.mxu0
    %269 = vmatprep.subr.mxu0 0.0
    %v270 = vand.u32 %v27, 4294901760
    %v271 = vsub.f32 %v27, %v270
    %272 = vmatpush1.msra.mxu0 %v271
    %273 = vmatprep.subr.mxu0 0.0
    %274 = vmatpush1.msra.mxu0 0.0
    %275 = vmatprep.subr.mxu0 0.0
    %276 = vmatpush1.msra.mxu0 0.0
    %277 = vmatprep.subr.mxu0 0.0
    %278 = vmatpush1.msra.mxu0 0.0
    %279 = vmatprep.subr.mxu0 0.0
    %280 = vmatpush1.msra.mxu0 0.0
    %281 = vmatprep.subr.mxu0 0.0
    %282 = vmatpush1.msra.mxu0 0.0
    %283 = vmatprep.subr.mxu0 0.0
    %284 = vmatpush1.msra.mxu0 0.0
    %285 = vmatprep.subr.mxu0 0.0
    %286 = vmatpush1.msra.mxu0 0.0
    %287 = vmatprep.subr.mxu0 0.0
    %288 = vmatpush1.msra.mxu0 0.0
    %289 = vmatprep.subr.mxu0 0.0
    %290 = vmatpush1.msra.mxu0 0.0
    %291 = vmatprep.subr.mxu0 0.0
    %292 = vmatpush1.msra.mxu0 0.0
    %293 = vmatprep.subr.mxu0 0.0
    %294 = vmatpush1.msra.mxu0 0.0
    %295 = vmatprep.subr.mxu0 0.0
    %296 = vmatpush1.msra.mxu0 0.0
    %297 = vmatprep.subr.mxu0 0.0
    %298 = vmatpush1.msra.mxu0 0.0
    %299 = vmatprep.subr.mxu0 0.0
    %300 = vmatpush1.msra.mxu0 0.0
    %301 = vmatprep.subr.mxu0 0.0
    %302 = vmatpush1.msra.mxu0 0.0
    %303 = vmatprep.subr.mxu0 0.0
    %304 = vmatpush1.msra.mxu0 0.0
    %305 = vmatprep.subr.mxu0 0.0
    %306 = vmatpush1.msra.mxu0 0.0
    %307 = vmatprep.subr.mxu0 0.0
    %308 = vmatpush1.msra.mxu0 0.0
    %309 = vmatprep.subr.mxu0 0.0
    %310 = vmatpush1.msra.mxu0 0.0
    %311 = vmatprep.subr.mxu0 0.0
    %312 = vmatpush1.msra.mxu0 0.0
    %313 = vmatprep.subr.mxu0 0.0
    %314 = vmatpush1.msra.mxu0 0.0
    %315 = vmatprep.subr.mxu0 0.0
    %316 = vmatpush1.msra.mxu0 0.0
    %317 = vmatprep.subr.mxu0 0.0
    %318 = vmatpush1.msra.mxu0 0.0
    %319 = vmatprep.subr.mxu0 0.0
    %320 = vmatpush1.msra.mxu0 0.0
    %321 = vmatprep.subr.mxu0 0.0
    %322 = vmatpush1.msra.mxu0 0.0
    %323 = vmatprep.subr.mxu0 0.0
    %324 = vmatpush1.msra.mxu0 0.0
    %325 = vmatprep.subr.mxu0 0.0
    %326 = vmatpush1.msra.mxu0 0.0
    %327 = vmatprep.subr.mxu0 0.0
    %328 = vmatpush1.msra.mxu0 0.0
    %329 = vmatprep.subr.mxu0 0.0
    %330 = vmatpush1.msra.mxu0 0.0
    %331 = vmatprep.subr.mxu0 0.0
    %332 = vmatpush1.msra.mxu0 0.0
    %333 = vmatprep.subr.mxu0 0.0
    %334 = vmatpush1.msra.mxu0 0.0
    %335 = vmatprep.mubr.f32.mxu0 0.0
    %v336 = vand.u32 %v58, 4294901760
    %v337 = vsub.f32 %v58, %v336
    %338 = vmatmul.mubr.f32.gmra.mrb[0].mxu0 %v337
    %v339 = vpop.f32.mrb[0].mxu0
    %v340 = vadd.f32 %v248, %v339
    %v341 = vpop.f32.mrb[0].mxu0
    %342 = vmatprep.mubr.f32.mxu0 0.0
    %v343 = vand.u32 %v61, 4294901760
    %v344 = vsub.f32 %v61, %v343
    %345 = vmatmul.mubr.f32.gmra.mrb[0].mxu0 %v344
    %v346 = vpop.f32.mrb[0].mxu0
    %v347 = vadd.f32 %v254, %v346
    %v348 = vpop.f32.mrb[0].mxu0
    %349 = vmatprep.mubr.f32.mxu0 0.0
    %v350 = vand.u32 %v64, 4294901760
    %v351 = vsub.f32 %v64, %v350
    %352 = vmatmul.mubr.f32.gmra.mrb[0].mxu0 %v351
    %v353 = vpop.f32.mrb[0].mxu0
    %v354 = vadd.f32 %v260, %v353
    %v355 = vpop.f32.mrb[0].mxu0
    %356 = vmatprep.mubr.f32.mxu0 0.0
    %v357 = vand.u32 %v67, 4294901760
    %v358 = vsub.f32 %v67, %v357
    %359 = vmatmul.mubr.f32.gmra.mrb[0].mxu0 %v358
    %v360 = vpop.f32.mrb[0].mxu0
    %v361 = vadd.f32 %v266, %v360
    %v362 = vpop.f32.mrb[0].mxu0
    %363 = vdwg.mxu0
    %364 = vmatprep.subr.mxu0 0.0
    %v365 = vand.u32 %v27, 4294901760
    %366 = vmatpush1.msra.mxu0 %v365
    %367 = vmatprep.subr.mxu0 0.0
    %368 = vmatpush1.msra.mxu0 0.0
    %369 = vmatprep.subr.mxu0 0.0
    %370 = vmatpush1.msra.mxu0 0.0
    %371 = vmatprep.subr.mxu0 0.0
    %372 = vmatpush1.msra.mxu0 0.0
    %373 = vmatprep.subr.mxu0 0.0
    %374 = vmatpush1.msra.mxu0 0.0
    %375 = vmatprep.subr.mxu0 0.0
    %376 = vmatpush1.msra.mxu0 0.0
    %377 = vmatprep.subr.mxu0 0.0
    %378 = vmatpush1.msra.mxu0 0.0
    %379 = vmatprep.subr.mxu0 0.0
    %380 = vmatpush1.msra.mxu0 0.0
    %381 = vmatprep.subr.mxu0 0.0
    %382 = vmatpush1.msra.mxu0 0.0
    %383 = vmatprep.subr.mxu0 0.0
    %384 = vmatpush1.msra.mxu0 0.0
    %385 = vmatprep.subr.mxu0 0.0
    %386 = vmatpush1.msra.mxu0 0.0
    %387 = vmatprep.subr.mxu0 0.0
    %388 = vmatpush1.msra.mxu0 0.0
    %389 = vmatprep.subr.mxu0 0.0
    %390 = vmatpush1.msra.mxu0 0.0
    %391 = vmatprep.subr.mxu0 0.0
    %392 = vmatpush1.msra.mxu0 0.0
    %393 = vmatprep.subr.mxu0 0.0
    %394 = vmatpush1.msra.mxu0 0.0
    %395 = vmatprep.subr.mxu0 0.0
    %396 = vmatpush1.msra.mxu0 0.0
    %397 = vmatprep.subr.mxu0 0.0
    %398 = vmatpush1.msra.mxu0 0.0
    %399 = vmatprep.subr.mxu0 0.0
    %400 = vmatpush1.msra.mxu0 0.0
    %401 = vmatprep.subr.mxu0 0.0
    %402 = vmatpush1.msra.mxu0 0.0
    %403 = vmatprep.subr.mxu0 0.0
    %404 = vmatpush1.msra.mxu0 0.0
    %405 = vmatprep.subr.mxu0 0.0
    %406 = vmatpush1.msra.mxu0 0.0
    %407 = vmatprep.subr.mxu0 0.0
    %408 = vmatpush1.msra.mxu0 0.0
    %409 = vmatprep.subr.mxu0 0.0
    %410 = vmatpush1.msra.mxu0 0.0
    %411 = vmatprep.subr.mxu0 0.0
    %412 = vmatpush1.msra.mxu0 0.0
    %413 = vmatprep.subr.mxu0 0.0
    %414 = vmatpush1.msra.mxu0 0.0
    %415 = vmatprep.subr.mxu0 0.0
    %416 = vmatpush1.msra.mxu0 0.0
    %417 = vmatprep.subr.mxu0 0.0
    %418 = vmatpush1.msra.mxu0 0.0
    %419 = vmatprep.subr.mxu0 0.0
    %420 = vmatpush1.msra.mxu0 0.0
    %421 = vmatprep.subr.mxu0 0.0
    %422 = vmatpush1.msra.mxu0 0.0
    %423 = vmatprep.subr.mxu0 0.0
    %424 = vmatpush1.msra.mxu0 0.0
    %425 = vmatprep.subr.mxu0 0.0
    %426 = vmatpush1.msra.mxu0 0.0
    %427 = vmatprep.subr.mxu0 0.0
    %428 = vmatpush1.msra.mxu0 0.0
    %429 = vmatprep.mubr.f32.mxu0 0.0
    %v430 = vand.u32 %v58, 4294901760
    %v431 = vsub.f32 %v58, %v430
    %v432 = vand.u32 %v431, 4294901760
    %433 = vmatmul.mubr.f32.gmra.mrb[0].mxu0 %v432
    %v434 = vpop.f32.mrb[0].mxu0
    %v435 = vadd.f32 %v340, %v434
    %v436 = vpop.f32.mrb[0].mxu0
    %437 = vmatprep.mubr.f32.mxu0 0.0
    %v438 = vand.u32 %v61, 4294901760
    %v439 = vsub.f32 %v61, %v438
    %v440 = vand.u32 %v439, 4294901760
    %441 = vmatmul.mubr.f32.gmra.mrb[0].mxu0 %v440
    %v442 = vpop.f32.mrb[0].mxu0
    %v443 = vadd.f32 %v347, %v442
    %v444 = vpop.f32.mrb[0].mxu0
    %445 = vmatprep.mubr.f32.mxu0 0.0
    %v446 = vand.u32 %v64, 4294901760
    %v447 = vsub.f32 %v64, %v446
    %v448 = vand.u32 %v447, 4294901760
    %449 = vmatmul.mubr.f32.gmra.mrb[0].mxu0 %v448
    %v450 = vpop.f32.mrb[0].mxu0
    %v451 = vadd.f32 %v354, %v450
    %v452 = vpop.f32.mrb[0].mxu0
    %453 = vmatprep.mubr.f32.mxu0 0.0
    %v454 = vand.u32 %v67, 4294901760
    %v455 = vsub.f32 %v67, %v454
    %v456 = vand.u32 %v455, 4294901760
    %457 = vmatmul.mubr.f32.gmra.mrb[0].mxu0 %v456
    %v458 = vpop.f32.mrb[0].mxu0
    %v459 = vadd.f32 %v361, %v458
    %v460 = vpop.f32.mrb[0].mxu0
    %461 = vdwg.mxu0
    %462 = vmatprep.subr.mxu0 0.0
    %v463 = vand.u32 %v27, 4294901760
    %v464 = vsub.f32 %v27, %v463
    %v465 = vand.u32 %v464, 4294901760
    %466 = vmatpush1.msra.mxu0 %v465
    %467 = vmatprep.subr.mxu0 0.0
    %468 = vmatpush1.msra.mxu0 0.0
    %469 = vmatprep.subr.mxu0 0.0
    %470 = vmatpush1.msra.mxu0 0.0
    %471 = vmatprep.subr.mxu0 0.0
    %472 = vmatpush1.msra.mxu0 0.0
    %473 = vmatprep.subr.mxu0 0.0
    %474 = vmatpush1.msra.mxu0 0.0
    %475 = vmatprep.subr.mxu0 0.0
    %476 = vmatpush1.msra.mxu0 0.0
    %477 = vmatprep.subr.mxu0 0.0
    %478 = vmatpush1.msra.mxu0 0.0
    %479 = vmatprep.subr.mxu0 0.0
    %480 = vmatpush1.msra.mxu0 0.0
    %481 = vmatprep.subr.mxu0 0.0
    %482 = vmatpush1.msra.mxu0 0.0
    %483 = vmatprep.subr.mxu0 0.0
    %484 = vmatpush1.msra.mxu0 0.0
    %485 = vmatprep.subr.mxu0 0.0
    %486 = vmatpush1.msra.mxu0 0.0
    %487 = vmatprep.subr.mxu0 0.0
    %488 = vmatpush1.msra.mxu0 0.0
    %489 = vmatprep.subr.mxu0 0.0
    %490 = vmatpush1.msra.mxu0 0.0
    %491 = vmatprep.subr.mxu0 0.0
    %492 = vmatpush1.msra.mxu0 0.0
    %493 = vmatprep.subr.mxu0 0.0
    %494 = vmatpush1.msra.mxu0 0.0
    %495 = vmatprep.subr.mxu0 0.0
    %496 = vmatpush1.msra.mxu0 0.0
    %497 = vmatprep.subr.mxu0 0.0
    %498 = vmatpush1.msra.mxu0 0.0
    %499 = vmatprep.subr.mxu0 0.0
    %500 = vmatpush1.msra.mxu0 0.0
    %501 = vmatprep.subr.mxu0 0.0
    %502 = vmatpush1.msra.mxu0 0.0
    %503 = vmatprep.subr.mxu0 0.0
    %504 = vmatpush1.msra.mxu0 0.0
    %505 = vmatprep.subr.mxu0 0.0
    %506 = vmatpush1.msra.mxu0 0.0
    %507 = vmatprep.subr.mxu0 0.0
    %508 = vmatpush1.msra.mxu0 0.0
    %509 = vmatprep.subr.mxu0 0.0
    %510 = vmatpush1.msra.mxu0 0.0
    %511 = vmatprep.subr.mxu0 0.0
    %512 = vmatpush1.msra.mxu0 0.0
    %513 = vmatprep.subr.mxu0 0.0
    %514 = vmatpush1.msra.mxu0 0.0
    %515 = vmatprep.subr.mxu0 0.0
    %516 = vmatpush1.msra.mxu0 0.0
    %517 = vmatprep.subr.mxu0 0.0
    %518 = vmatpush1.msra.mxu0 0.0
    %519 = vmatprep.subr.mxu0 0.0
    %520 = vmatpush1.msra.mxu0 0.0
    %521 = vmatprep.subr.mxu0 0.0
    %522 = vmatpush1.msra.mxu0 0.0
    %523 = vmatprep.subr.mxu0 0.0
    %524 = vmatpush1.msra.mxu0 0.0
    %525 = vmatprep.subr.mxu0 0.0
    %526 = vmatpush1.msra.mxu0 0.0
    %527 = vmatprep.subr.mxu0 0.0
    %528 = vmatpush1.msra.mxu0 0.0
    %529 = vmatprep.mubr.f32.mxu0 0.0
    %v530 = vand.u32 %v58, 4294901760
    %531 = vmatmul.mubr.f32.gmra.mrb[0].mxu0 %v530
    %v532 = vpop.f32.mrb[0].mxu0
    %v533 = vadd.f32 %v435, %v532
    %v534 = vpop.f32.mrb[0].mxu0
    %535 = vmatprep.mubr.f32.mxu0 0.0
    %v536 = vand.u32 %v61, 4294901760
    %537 = vmatmul.mubr.f32.gmra.mrb[0].mxu0 %v536
    %v538 = vpop.f32.mrb[0].mxu0
    %v539 = vadd.f32 %v443, %v538
    %v540 = vpop.f32.mrb[0].mxu0
    %541 = vmatprep.mubr.f32.mxu0 0.0
    %v542 = vand.u32 %v64, 4294901760
    %543 = vmatmul.mubr.f32.gmra.mrb[0].mxu0 %v542
    %v544 = vpop.f32.mrb[0].mxu0
    %v545 = vadd.f32 %v451, %v544
    %v546 = vpop.f32.mrb[0].mxu0
    %547 = vmatprep.mubr.f32.mxu0 0.0
    %v548 = vand.u32 %v67, 4294901760
    %549 = vmatmul.mubr.f32.gmra.mrb[0].mxu0 %v548
    %v550 = vpop.f32.mrb[0].mxu0
    %v551 = vadd.f32 %v459, %v550
    %v552 = vpop.f32.mrb[0].mxu0
    %553 = vdwg.mxu0
    %554 = vmatprep.subr.mxu0 0.0
    %v555 = vand.u32 %v27, 4294901760
    %556 = vmatpush1.msra.mxu0 %v555
    %557 = vmatprep.subr.mxu0 0.0
    %558 = vmatpush1.msra.mxu0 0.0
    %559 = vmatprep.subr.mxu0 0.0
    %560 = vmatpush1.msra.mxu0 0.0
    %561 = vmatprep.subr.mxu0 0.0
    %562 = vmatpush1.msra.mxu0 0.0
    %563 = vmatprep.subr.mxu0 0.0
    %564 = vmatpush1.msra.mxu0 0.0
    %565 = vmatprep.subr.mxu0 0.0
    %566 = vmatpush1.msra.mxu0 0.0
    %567 = vmatprep.subr.mxu0 0.0
    %568 = vmatpush1.msra.mxu0 0.0
    %569 = vmatprep.subr.mxu0 0.0
    %570 = vmatpush1.msra.mxu0 0.0
    %571 = vmatprep.subr.mxu0 0.0
    %572 = vmatpush1.msra.mxu0 0.0
    %573 = vmatprep.subr.mxu0 0.0
    %574 = vmatpush1.msra.mxu0 0.0
    %575 = vmatprep.subr.mxu0 0.0
    %576 = vmatpush1.msra.mxu0 0.0
    %577 = vmatprep.subr.mxu0 0.0
    %578 = vmatpush1.msra.mxu0 0.0
    %579 = vmatprep.subr.mxu0 0.0
    %580 = vmatpush1.msra.mxu0 0.0
    %581 = vmatprep.subr.mxu0 0.0
    %582 = vmatpush1.msra.mxu0 0.0
    %583 = vmatprep.subr.mxu0 0.0
    %584 = vmatpush1.msra.mxu0 0.0
    %585 = vmatprep.subr.mxu0 0.0
    %586 = vmatpush1.msra.mxu0 0.0
    %587 = vmatprep.subr.mxu0 0.0
    %588 = vmatpush1.msra.mxu0 0.0
    %589 = vmatprep.subr.mxu0 0.0
    %590 = vmatpush1.msra.mxu0 0.0
    %591 = vmatprep.subr.mxu0 0.0
    %592 = vmatpush1.msra.mxu0 0.0
    %593 = vmatprep.subr.mxu0 0.0
    %594 = vmatpush1.msra.mxu0 0.0
    %595 = vmatprep.subr.mxu0 0.0
    %596 = vmatpush1.msra.mxu0 0.0
    %597 = vmatprep.subr.mxu0 0.0
    %598 = vmatpush1.msra.mxu0 0.0
    %599 = vmatprep.subr.mxu0 0.0
    %600 = vmatpush1.msra.mxu0 0.0
    %601 = vmatprep.subr.mxu0 0.0
    %602 = vmatpush1.msra.mxu0 0.0
    %603 = vmatprep.subr.mxu0 0.0
    %604 = vmatpush1.msra.mxu0 0.0
    %605 = vmatprep.subr.mxu0 0.0
    %606 = vmatpush1.msra.mxu0 0.0
    %607 = vmatprep.subr.mxu0 0.0
    %608 = vmatpush1.msra.mxu0 0.0
    %609 = vmatprep.subr.mxu0 0.0
    %610 = vmatpush1.msra.mxu0 0.0
    %611 = vmatprep.subr.mxu0 0.0
    %612 = vmatpush1.msra.mxu0 0.0
    %613 = vmatprep.subr.mxu0 0.0
    %614 = vmatpush1.msra.mxu0 0.0
    %615 = vmatprep.subr.mxu0 0.0
    %616 = vmatpush1.msra.mxu0 0.0
    %617 = vmatprep.subr.mxu0 0.0
    %618 = vmatpush1.msra.mxu0 0.0
    %619 = vmatprep.mubr.f32.mxu0 0.0
    %v620 = vand.u32 %v58, 4294901760
    %621 = vmatmul.mubr.f32.gmra.mrb[0].mxu0 %v620
    %v622 = vpop.f32.mrb[0].mxu0
    %v623 = vadd.f32 %v533, %v622
    %v624 = vpop.f32.mrb[0].mxu0
    %625 = vmatprep.mubr.f32.mxu0 0.0
    %v626 = vand.u32 %v61, 4294901760
    %627 = vmatmul.mubr.f32.gmra.mrb[0].mxu0 %v626
    %v628 = vpop.f32.mrb[0].mxu0
    %v629 = vadd.f32 %v539, %v628
    %v630 = vpop.f32.mrb[0].mxu0
    %631 = vmatprep.mubr.f32.mxu0 0.0
    %v632 = vand.u32 %v64, 4294901760
    %633 = vmatmul.mubr.f32.gmra.mrb[0].mxu0 %v632
    %v634 = vpop.f32.mrb[0].mxu0
    %v635 = vadd.f32 %v545, %v634
    %v636 = vpop.f32.mrb[0].mxu0
    %637 = vmatprep.mubr.f32.mxu0 0.0
    %v638 = vand.u32 %v67, 4294901760
    %639 = vmatmul.mubr.f32.gmra.mrb[0].mxu0 %v638
    %v640 = vpop.f32.mrb[0].mxu0
    %v641 = vadd.f32 %v551, %v640
    %v642 = vpop.f32.mrb[0].mxu0
    %643 = vdwg.mxu0
    %v644 = vmax.f32 %v623, 0.0
    %v645 = vmax.f32 %v629, 0.0
    %v646 = vmax.f32 %v635, 0.0
    %v647 = vmax.f32 %v641, 0.0
    %v648 = vld [vmem:[%s3] sm:$0xff]
    %v649 = vld [vmem:[%s3 + $0x8] sm:$0xff]
    %v650 = vld [vmem:[%s3 + $0x10] sm:$0xff]
    %v651 = vld [vmem:[%s3 + $0x18] sm:$0xff]
    %v652 = vld [vmem:[%s4] sm:$0xff]
    %v653 = vld [vmem:[%s4 + $0x8] sm:$0xff]
    %v654 = vld [vmem:[%s4 + $0x10] sm:$0xff]
    %v655 = vld [vmem:[%s4 + $0x18] sm:$0xff]
    %657 = vset.pattern.permute.xlu0 0
    %658 = vperm.xlu0 %657, %v652
    %v659 = vpop.permute.xlu0 %658
    %662 = vset.pattern.permute.xlu0 0
    %663 = vperm.xlu0 %662, %v653
    %v664 = vpop.permute.xlu0 %663
    %667 = vset.pattern.permute.xlu0 0
    %668 = vperm.xlu0 %667, %v654
    %v669 = vpop.permute.xlu0 %668
    %672 = vset.pattern.permute.xlu0 0
    %673 = vperm.xlu0 %672, %v655
    %v674 = vpop.permute.xlu0 %673
    %vm676 = vcmask 261120
    %v678 = vsel %vm676, %v648, 0
    %v681 = vsel %vm676, %v649, 0
    %v684 = vsel %vm676, %v650, 0
    %v687 = vsel %vm676, %v651, 0
    %689 = vmatprep.subr.mxu0 0.0
    %v690 = vand.u32 %v644, 4294901760
    %691 = vmatpush1.msra.mxu0 %v690
    %692 = vmatprep.subr.mxu0 0.0
    %v693 = vand.u32 %v645, 4294901760
    %694 = vmatpush1.msra.mxu0 %v693
    %695 = vmatprep.subr.mxu0 0.0
    %v696 = vand.u32 %v646, 4294901760
    %697 = vmatpush1.msra.mxu0 %v696
    %698 = vmatprep.subr.mxu0 0.0
    %v699 = vand.u32 %v647, 4294901760
    %700 = vmatpush1.msra.mxu0 %v699
    %701 = vmatprep.subr.mxu0 0.0
    %702 = vmatpush1.msra.mxu0 0.0
    %703 = vmatprep.subr.mxu0 0.0
    %704 = vmatpush1.msra.mxu0 0.0
    %705 = vmatprep.subr.mxu0 0.0
    %706 = vmatpush1.msra.mxu0 0.0
    %707 = vmatprep.subr.mxu0 0.0
    %708 = vmatpush1.msra.mxu0 0.0
    %709 = vmatprep.subr.mxu0 0.0
    %710 = vmatpush1.msra.mxu0 0.0
    %711 = vmatprep.subr.mxu0 0.0
    %712 = vmatpush1.msra.mxu0 0.0
    %713 = vmatprep.subr.mxu0 0.0
    %714 = vmatpush1.msra.mxu0 0.0
    %715 = vmatprep.subr.mxu0 0.0
    %716 = vmatpush1.msra.mxu0 0.0
    %717 = vmatprep.subr.mxu0 0.0
    %718 = vmatpush1.msra.mxu0 0.0
    %719 = vmatprep.subr.mxu0 0.0
    %720 = vmatpush1.msra.mxu0 0.0
    %721 = vmatprep.subr.mxu0 0.0
    %722 = vmatpush1.msra.mxu0 0.0
    %723 = vmatprep.subr.mxu0 0.0
    %724 = vmatpush1.msra.mxu0 0.0
    %725 = vmatprep.subr.mxu0 0.0
    %726 = vmatpush1.msra.mxu0 0.0
    %727 = vmatprep.subr.mxu0 0.0
    %728 = vmatpush1.msra.mxu0 0.0
    %729 = vmatprep.subr.mxu0 0.0
    %730 = vmatpush1.msra.mxu0 0.0
    %731 = vmatprep.subr.mxu0 0.0
    %732 = vmatpush1.msra.mxu0 0.0
    %733 = vmatprep.subr.mxu0 0.0
    %734 = vmatpush1.msra.mxu0 0.0
    %735 = vmatprep.subr.mxu0 0.0
    %736 = vmatpush1.msra.mxu0 0.0
    %737 = vmatprep.subr.mxu0 0.0
    %738 = vmatpush1.msra.mxu0 0.0
    %739 = vmatprep.subr.mxu0 0.0
    %740 = vmatpush1.msra.mxu0 0.0
    %741 = vmatprep.subr.mxu0 0.0
    %742 = vmatpush1.msra.mxu0 0.0
    %743 = vmatprep.subr.mxu0 0.0
    %744 = vmatpush1.msra.mxu0 0.0
    %745 = vmatprep.subr.mxu0 0.0
    %746 = vmatpush1.msra.mxu0 0.0
    %747 = vmatprep.subr.mxu0 0.0
    %748 = vmatpush1.msra.mxu0 0.0
    %749 = vmatprep.subr.mxu0 0.0
    %750 = vmatpush1.msra.mxu0 0.0
    %751 = vmatprep.subr.mxu0 0.0
    %752 = vmatpush1.msra.mxu0 0.0
    %753 = vmatprep.subr.mxu0 0.0
    %754 = vmatpush1.msra.mxu0 0.0
    %755 = vmatprep.subr.mxu0 0.0
    %756 = vmatpush1.msra.mxu0 0.0
    %757 = vmatprep.mubr.f32.mxu0 0.0
    %v758 = vand.u32 %v678, 4294901760
    %v759 = vsub.f32 %v678, %v758
    %v760 = vand.u32 %v759, 4294901760
    %v761 = vsub.f32 %v759, %v760
    %v762 = vand.u32 %v761, 4294901760
    %763 = vmatmul.mubr.f32.gmra.mrb[0].mxu0 %v762
    %v764 = vpop.f32.mrb[0].mxu0
    %v765 = vadd.f32 %v659, %v764
    %v766 = vpop.f32.mrb[0].mxu0
    %767 = vmatprep.mubr.f32.mxu0 0.0
    %v768 = vand.u32 %v681, 4294901760
    %v769 = vsub.f32 %v681, %v768
    %v770 = vand.u32 %v769, 4294901760
    %v771 = vsub.f32 %v769, %v770
    %v772 = vand.u32 %v771, 4294901760
    %773 = vmatmul.mubr.f32.gmra.mrb[0].mxu0 %v772
    %v774 = vpop.f32.mrb[0].mxu0
    %v775 = vadd.f32 %v664, %v774
    %v776 = vpop.f32.mrb[0].mxu0
    %777 = vmatprep.mubr.f32.mxu0 0.0
    %v778 = vand.u32 %v684, 4294901760
    %v779 = vsub.f32 %v684, %v778
    %v780 = vand.u32 %v779, 4294901760
    %v781 = vsub.f32 %v779, %v780
    %v782 = vand.u32 %v781, 4294901760
    %783 = vmatmul.mubr.f32.gmra.mrb[0].mxu0 %v782
    %v784 = vpop.f32.mrb[0].mxu0
    %v785 = vadd.f32 %v669, %v784
    %v786 = vpop.f32.mrb[0].mxu0
    %787 = vmatprep.mubr.f32.mxu0 0.0
    %v788 = vand.u32 %v687, 4294901760
    %v789 = vsub.f32 %v687, %v788
    %v790 = vand.u32 %v789, 4294901760
    %v791 = vsub.f32 %v789, %v790
    %v792 = vand.u32 %v791, 4294901760
    %793 = vmatmul.mubr.f32.gmra.mrb[0].mxu0 %v792
    %v794 = vpop.f32.mrb[0].mxu0
    %v795 = vadd.f32 %v674, %v794
    %v796 = vpop.f32.mrb[0].mxu0
    %797 = vdwg.mxu0
    %798 = vmatprep.subr.mxu0 0.0
    %v799 = vand.u32 %v644, 4294901760
    %v800 = vsub.f32 %v644, %v799
    %v801 = vand.u32 %v800, 4294901760
    %v802 = vsub.f32 %v800, %v801
    %v803 = vand.u32 %v802, 4294901760
    %804 = vmatpush1.msra.mxu0 %v803
    %805 = vmatprep.subr.mxu0 0.0
    %v806 = vand.u32 %v645, 4294901760
    %v807 = vsub.f32 %v645, %v806
    %v808 = vand.u32 %v807, 4294901760
    %v809 = vsub.f32 %v807, %v808
    %v810 = vand.u32 %v809, 4294901760
    %811 = vmatpush1.msra.mxu0 %v810
    %812 = vmatprep.subr.mxu0 0.0
    %v813 = vand.u32 %v646, 4294901760
    %v814 = vsub.f32 %v646, %v813
    %v815 = vand.u32 %v814, 4294901760
    %v816 = vsub.f32 %v814, %v815
    %v817 = vand.u32 %v816, 4294901760
    %818 = vmatpush1.msra.mxu0 %v817
    %819 = vmatprep.subr.mxu0 0.0
    %v820 = vand.u32 %v647, 4294901760
    %v821 = vsub.f32 %v647, %v820
    %v822 = vand.u32 %v821, 4294901760
    %v823 = vsub.f32 %v821, %v822
    %v824 = vand.u32 %v823, 4294901760
    %825 = vmatpush1.msra.mxu0 %v824
    %826 = vmatprep.subr.mxu0 0.0
    %827 = vmatpush1.msra.mxu0 0.0
    %828 = vmatprep.subr.mxu0 0.0
    %829 = vmatpush1.msra.mxu0 0.0
    %830 = vmatprep.subr.mxu0 0.0
    %831 = vmatpush1.msra.mxu0 0.0
    %832 = vmatprep.subr.mxu0 0.0
    %833 = vmatpush1.msra.mxu0 0.0
    %834 = vmatprep.subr.mxu0 0.0
    %835 = vmatpush1.msra.mxu0 0.0
    %836 = vmatprep.subr.mxu0 0.0
    %837 = vmatpush1.msra.mxu0 0.0
    %838 = vmatprep.subr.mxu0 0.0
    %839 = vmatpush1.msra.mxu0 0.0
    %840 = vmatprep.subr.mxu0 0.0
    %841 = vmatpush1.msra.mxu0 0.0
    %842 = vmatprep.subr.mxu0 0.0
    %843 = vmatpush1.msra.mxu0 0.0
    %844 = vmatprep.subr.mxu0 0.0
    %845 = vmatpush1.msra.mxu0 0.0
    %846 = vmatprep.subr.mxu0 0.0
    %847 = vmatpush1.msra.mxu0 0.0
    %848 = vmatprep.subr.mxu0 0.0
    %849 = vmatpush1.msra.mxu0 0.0
    %850 = vmatprep.subr.mxu0 0.0
    %851 = vmatpush1.msra.mxu0 0.0
    %852 = vmatprep.subr.mxu0 0.0
    %853 = vmatpush1.msra.mxu0 0.0
    %854 = vmatprep.subr.mxu0 0.0
    %855 = vmatpush1.msra.mxu0 0.0
    %856 = vmatprep.subr.mxu0 0.0
    %857 = vmatpush1.msra.mxu0 0.0
    %858 = vmatprep.subr.mxu0 0.0
    %859 = vmatpush1.msra.mxu0 0.0
    %860 = vmatprep.subr.mxu0 0.0
    %861 = vmatpush1.msra.mxu0 0.0
    %862 = vmatprep.subr.mxu0 0.0
    %863 = vmatpush1.msra.mxu0 0.0
    %864 = vmatprep.subr.mxu0 0.0
    %865 = vmatpush1.msra.mxu0 0.0
    %866 = vmatprep.subr.mxu0 0.0
    %867 = vmatpush1.msra.mxu0 0.0
    %868 = vmatprep.subr.mxu0 0.0
    %869 = vmatpush1.msra.mxu0 0.0
    %870 = vmatprep.subr.mxu0 0.0
    %871 = vmatpush1.msra.mxu0 0.0
    %872 = vmatprep.subr.mxu0 0.0
    %873 = vmatpush1.msra.mxu0 0.0
    %874 = vmatprep.subr.mxu0 0.0
    %875 = vmatpush1.msra.mxu0 0.0
    %876 = vmatprep.subr.mxu0 0.0
    %877 = vmatpush1.msra.mxu0 0.0
    %878 = vmatprep.subr.mxu0 0.0
    %879 = vmatpush1.msra.mxu0 0.0
    %880 = vmatprep.subr.mxu0 0.0
    %881 = vmatpush1.msra.mxu0 0.0
    %882 = vmatprep.mubr.f32.mxu0 0.0
    %v883 = vand.u32 %v678, 4294901760
    %884 = vmatmul.mubr.f32.gmra.mrb[0].mxu0 %v883
    %v885 = vpop.f32.mrb[0].mxu0
    %v886 = vadd.f32 %v765, %v885
    %v887 = vpop.f32.mrb[0].mxu0
    %888 = vmatprep.mubr.f32.mxu0 0.0
    %v889 = vand.u32 %v681, 4294901760
    %890 = vmatmul.mubr.f32.gmra.mrb[0].mxu0 %v889
    %v891 = vpop.f32.mrb[0].mxu0
    %v892 = vadd.f32 %v775, %v891
    %v893 = vpop.f32.mrb[0].mxu0
    %894 = vmatprep.mubr.f32.mxu0 0.0
    %v895 = vand.u32 %v684, 4294901760
    %896 = vmatmul.mubr.f32.gmra.mrb[0].mxu0 %v895
    %v897 = vpop.f32.mrb[0].mxu0
    %v898 = vadd.f32 %v785, %v897
    %v899 = vpop.f32.mrb[0].mxu0
    %900 = vmatprep.mubr.f32.mxu0 0.0
    %v901 = vand.u32 %v687, 4294901760
    %902 = vmatmul.mubr.f32.gmra.mrb[0].mxu0 %v901
    %v903 = vpop.f32.mrb[0].mxu0
    %v904 = vadd.f32 %v795, %v903
    %v905 = vpop.f32.mrb[0].mxu0
    %906 = vdwg.mxu0
    %907 = vmatprep.subr.mxu0 0.0
    %v908 = vand.u32 %v644, 4294901760
    %v909 = vsub.f32 %v644, %v908
    %910 = vmatpush1.msra.mxu0 %v909
    %911 = vmatprep.subr.mxu0 0.0
    %v912 = vand.u32 %v645, 4294901760
    %v913 = vsub.f32 %v645, %v912
    %914 = vmatpush1.msra.mxu0 %v913
    %915 = vmatprep.subr.mxu0 0.0
    %v916 = vand.u32 %v646, 4294901760
    %v917 = vsub.f32 %v646, %v916
    %918 = vmatpush1.msra.mxu0 %v917
    %919 = vmatprep.subr.mxu0 0.0
    %v920 = vand.u32 %v647, 4294901760
    %v921 = vsub.f32 %v647, %v920
    %922 = vmatpush1.msra.mxu0 %v921
    %923 = vmatprep.subr.mxu0 0.0
    %924 = vmatpush1.msra.mxu0 0.0
    %925 = vmatprep.subr.mxu0 0.0
    %926 = vmatpush1.msra.mxu0 0.0
    %927 = vmatprep.subr.mxu0 0.0
    %928 = vmatpush1.msra.mxu0 0.0
    %929 = vmatprep.subr.mxu0 0.0
    %930 = vmatpush1.msra.mxu0 0.0
    %931 = vmatprep.subr.mxu0 0.0
    %932 = vmatpush1.msra.mxu0 0.0
    %933 = vmatprep.subr.mxu0 0.0
    %934 = vmatpush1.msra.mxu0 0.0
    %935 = vmatprep.subr.mxu0 0.0
    %936 = vmatpush1.msra.mxu0 0.0
    %937 = vmatprep.subr.mxu0 0.0
    %938 = vmatpush1.msra.mxu0 0.0
    %939 = vmatprep.subr.mxu0 0.0
    %940 = vmatpush1.msra.mxu0 0.0
    %941 = vmatprep.subr.mxu0 0.0
    %942 = vmatpush1.msra.mxu0 0.0
    %943 = vmatprep.subr.mxu0 0.0
    %944 = vmatpush1.msra.mxu0 0.0
    %945 = vmatprep.subr.mxu0 0.0
    %946 = vmatpush1.msra.mxu0 0.0
    %947 = vmatprep.subr.mxu0 0.0
    %948 = vmatpush1.msra.mxu0 0.0
    %949 = vmatprep.subr.mxu0 0.0
    %950 = vmatpush1.msra.mxu0 0.0
    %951 = vmatprep.subr.mxu0 0.0
    %952 = vmatpush1.msra.mxu0 0.0
    %953 = vmatprep.subr.mxu0 0.0
    %954 = vmatpush1.msra.mxu0 0.0
    %955 = vmatprep.subr.mxu0 0.0
    %956 = vmatpush1.msra.mxu0 0.0
    %957 = vmatprep.subr.mxu0 0.0
    %958 = vmatpush1.msra.mxu0 0.0
    %959 = vmatprep.subr.mxu0 0.0
    %960 = vmatpush1.msra.mxu0 0.0
    %961 = vmatprep.subr.mxu0 0.0
    %962 = vmatpush1.msra.mxu0 0.0
    %963 = vmatprep.subr.mxu0 0.0
    %964 = vmatpush1.msra.mxu0 0.0
    %965 = vmatprep.subr.mxu0 0.0
    %966 = vmatpush1.msra.mxu0 0.0
    %967 = vmatprep.subr.mxu0 0.0
    %968 = vmatpush1.msra.mxu0 0.0
    %969 = vmatprep.subr.mxu0 0.0
    %970 = vmatpush1.msra.mxu0 0.0
    %971 = vmatprep.subr.mxu0 0.0
    %972 = vmatpush1.msra.mxu0 0.0
    %973 = vmatprep.subr.mxu0 0.0
    %974 = vmatpush1.msra.mxu0 0.0
    %975 = vmatprep.subr.mxu0 0.0
    %976 = vmatpush1.msra.mxu0 0.0
    %977 = vmatprep.subr.mxu0 0.0
    %978 = vmatpush1.msra.mxu0 0.0
    %979 = vmatprep.mubr.f32.mxu0 0.0
    %v980 = vand.u32 %v678, 4294901760
    %v981 = vsub.f32 %v678, %v980
    %982 = vmatmul.mubr.f32.gmra.mrb[0].mxu0 %v981
    %v983 = vpop.f32.mrb[0].mxu0
    %v984 = vadd.f32 %v886, %v983
    %v985 = vpop.f32.mrb[0].mxu0
    %986 = vmatprep.mubr.f32.mxu0 0.0
    %v987 = vand.u32 %v681, 4294901760
    %v988 = vsub.f32 %v681, %v987
    %989 = vmatmul.mubr.f32.gmra.mrb[0].mxu0 %v988
    %v990 = vpop.f32.mrb[0].mxu0
    %v991 = vadd.f32 %v892, %v990
    %v992 = vpop.f32.mrb[0].mxu0
    %993 = vmatprep.mubr.f32.mxu0 0.0
    %v994 = vand.u32 %v684, 4294901760
    %v995 = vsub.f32 %v684, %v994
    %996 = vmatmul.mubr.f32.gmra.mrb[0].mxu0 %v995
    %v997 = vpop.f32.mrb[0].mxu0
    %v998 = vadd.f32 %v898, %v997
    %v999 = vpop.f32.mrb[0].mxu0
    %1000 = vmatprep.mubr.f32.mxu0 0.0
    %v1001 = vand.u32 %v687, 4294901760
    %v1002 = vsub.f32 %v687, %v1001
    %1003 = vmatmul.mubr.f32.gmra.mrb[0].mxu0 %v1002
    %v1004 = vpop.f32.mrb[0].mxu0
    %v1005 = vadd.f32 %v904, %v1004
    %v1006 = vpop.f32.mrb[0].mxu0
    %1007 = vdwg.mxu0
    %1008 = vmatprep.subr.mxu0 0.0
    %v1009 = vand.u32 %v644, 4294901760
    %1010 = vmatpush1.msra.mxu0 %v1009
    %1011 = vmatprep.subr.mxu0 0.0
    %v1012 = vand.u32 %v645, 4294901760
    %1013 = vmatpush1.msra.mxu0 %v1012
    %1014 = vmatprep.subr.mxu0 0.0
    %v1015 = vand.u32 %v646, 4294901760
    %1016 = vmatpush1.msra.mxu0 %v1015
    %1017 = vmatprep.subr.mxu0 0.0
    %v1018 = vand.u32 %v647, 4294901760
    %1019 = vmatpush1.msra.mxu0 %v1018
    %1020 = vmatprep.subr.mxu0 0.0
    %1021 = vmatpush1.msra.mxu0 0.0
    %1022 = vmatprep.subr.mxu0 0.0
    %1023 = vmatpush1.msra.mxu0 0.0
    %1024 = vmatprep.subr.mxu0 0.0
    %1025 = vmatpush1.msra.mxu0 0.0
    %1026 = vmatprep.subr.mxu0 0.0
    %1027 = vmatpush1.msra.mxu0 0.0
    %1028 = vmatprep.subr.mxu0 0.0
    %1029 = vmatpush1.msra.mxu0 0.0
    %1030 = vmatprep.subr.mxu0 0.0
    %1031 = vmatpush1.msra.mxu0 0.0
    %1032 = vmatprep.subr.mxu0 0.0
    %1033 = vmatpush1.msra.mxu0 0.0
    %1034 = vmatprep.subr.mxu0 0.0
    %1035 = vmatpush1.msra.mxu0 0.0
    %1036 = vmatprep.subr.mxu0 0.0
    %1037 = vmatpush1.msra.mxu0 0.0
    %1038 = vmatprep.subr.mxu0 0.0
    %1039 = vmatpush1.msra.mxu0 0.0
    %1040 = vmatprep.subr.mxu0 0.0
    %1041 = vmatpush1.msra.mxu0 0.0
    %1042 = vmatprep.subr.mxu0 0.0
    %1043 = vmatpush1.msra.mxu0 0.0
    %1044 = vmatprep.subr.mxu0 0.0
    %1045 = vmatpush1.msra.mxu0 0.0
    %1046 = vmatprep.subr.mxu0 0.0
    %1047 = vmatpush1.msra.mxu0 0.0
    %1048 = vmatprep.subr.mxu0 0.0
    %1049 = vmatpush1.msra.mxu0 0.0
    %1050 = vmatprep.subr.mxu0 0.0
    %1051 = vmatpush1.msra.mxu0 0.0
    %1052 = vmatprep.subr.mxu0 0.0
    %1053 = vmatpush1.msra.mxu0 0.0
    %1054 = vmatprep.subr.mxu0 0.0
    %1055 = vmatpush1.msra.mxu0 0.0
    %1056 = vmatprep.subr.mxu0 0.0
    %1057 = vmatpush1.msra.mxu0 0.0
    %1058 = vmatprep.subr.mxu0 0.0
    %1059 = vmatpush1.msra.mxu0 0.0
    %1060 = vmatprep.subr.mxu0 0.0
    %1061 = vmatpush1.msra.mxu0 0.0
    %1062 = vmatprep.subr.mxu0 0.0
    %1063 = vmatpush1.msra.mxu0 0.0
    %1064 = vmatprep.subr.mxu0 0.0
    %1065 = vmatpush1.msra.mxu0 0.0
    %1066 = vmatprep.subr.mxu0 0.0
    %1067 = vmatpush1.msra.mxu0 0.0
    %1068 = vmatprep.subr.mxu0 0.0
    %1069 = vmatpush1.msra.mxu0 0.0
    %1070 = vmatprep.subr.mxu0 0.0
    %1071 = vmatpush1.msra.mxu0 0.0
    %1072 = vmatprep.subr.mxu0 0.0
    %1073 = vmatpush1.msra.mxu0 0.0
    %1074 = vmatprep.subr.mxu0 0.0
    %1075 = vmatpush1.msra.mxu0 0.0
    %1076 = vmatprep.mubr.f32.mxu0 0.0
    %v1077 = vand.u32 %v678, 4294901760
    %v1078 = vsub.f32 %v678, %v1077
    %v1079 = vand.u32 %v1078, 4294901760
    %1080 = vmatmul.mubr.f32.gmra.mrb[0].mxu0 %v1079
    %v1081 = vpop.f32.mrb[0].mxu0
    %v1082 = vadd.f32 %v984, %v1081
    %v1083 = vpop.f32.mrb[0].mxu0
    %1084 = vmatprep.mubr.f32.mxu0 0.0
    %v1085 = vand.u32 %v681, 4294901760
    %v1086 = vsub.f32 %v681, %v1085
    %v1087 = vand.u32 %v1086, 4294901760
    %1088 = vmatmul.mubr.f32.gmra.mrb[0].mxu0 %v1087
    %v1089 = vpop.f32.mrb[0].mxu0
    %v1090 = vadd.f32 %v991, %v1089
    %v1091 = vpop.f32.mrb[0].mxu0
    %1092 = vmatprep.mubr.f32.mxu0 0.0
    %v1093 = vand.u32 %v684, 4294901760
    %v1094 = vsub.f32 %v684, %v1093
    %v1095 = vand.u32 %v1094, 4294901760
    %1096 = vmatmul.mubr.f32.gmra.mrb[0].mxu0 %v1095
    %v1097 = vpop.f32.mrb[0].mxu0
    %v1098 = vadd.f32 %v998, %v1097
    %v1099 = vpop.f32.mrb[0].mxu0
    %1100 = vmatprep.mubr.f32.mxu0 0.0
    %v1101 = vand.u32 %v687, 4294901760
    %v1102 = vsub.f32 %v687, %v1101
    %v1103 = vand.u32 %v1102, 4294901760
    %1104 = vmatmul.mubr.f32.gmra.mrb[0].mxu0 %v1103
    %v1105 = vpop.f32.mrb[0].mxu0
    %v1106 = vadd.f32 %v1005, %v1105
    %v1107 = vpop.f32.mrb[0].mxu0
    %1108 = vdwg.mxu0
    %1109 = vmatprep.subr.mxu0 0.0
    %v1110 = vand.u32 %v644, 4294901760
    %v1111 = vsub.f32 %v644, %v1110
    %v1112 = vand.u32 %v1111, 4294901760
    %1113 = vmatpush1.msra.mxu0 %v1112
    %1114 = vmatprep.subr.mxu0 0.0
    %v1115 = vand.u32 %v645, 4294901760
    %v1116 = vsub.f32 %v645, %v1115
    %v1117 = vand.u32 %v1116, 4294901760
    %1118 = vmatpush1.msra.mxu0 %v1117
    %1119 = vmatprep.subr.mxu0 0.0
    %v1120 = vand.u32 %v646, 4294901760
    %v1121 = vsub.f32 %v646, %v1120
    %v1122 = vand.u32 %v1121, 4294901760
    %1123 = vmatpush1.msra.mxu0 %v1122
    %1124 = vmatprep.subr.mxu0 0.0
    %v1125 = vand.u32 %v647, 4294901760
    %v1126 = vsub.f32 %v647, %v1125
    %v1127 = vand.u32 %v1126, 4294901760
    %1128 = vmatpush1.msra.mxu0 %v1127
    %1129 = vmatprep.subr.mxu0 0.0
    %1130 = vmatpush1.msra.mxu0 0.0
    %1131 = vmatprep.subr.mxu0 0.0
    %1132 = vmatpush1.msra.mxu0 0.0
    %1133 = vmatprep.subr.mxu0 0.0
    %1134 = vmatpush1.msra.mxu0 0.0
    %1135 = vmatprep.subr.mxu0 0.0
    %1136 = vmatpush1.msra.mxu0 0.0
    %1137 = vmatprep.subr.mxu0 0.0
    %1138 = vmatpush1.msra.mxu0 0.0
    %1139 = vmatprep.subr.mxu0 0.0
    %1140 = vmatpush1.msra.mxu0 0.0
    %1141 = vmatprep.subr.mxu0 0.0
    %1142 = vmatpush1.msra.mxu0 0.0
    %1143 = vmatprep.subr.mxu0 0.0
    %1144 = vmatpush1.msra.mxu0 0.0
    %1145 = vmatprep.subr.mxu0 0.0
    %1146 = vmatpush1.msra.mxu0 0.0
    %1147 = vmatprep.subr.mxu0 0.0
    %1148 = vmatpush1.msra.mxu0 0.0
    %1149 = vmatprep.subr.mxu0 0.0
    %1150 = vmatpush1.msra.mxu0 0.0
    %1151 = vmatprep.subr.mxu0 0.0
    %1152 = vmatpush1.msra.mxu0 0.0
    %1153 = vmatprep.subr.mxu0 0.0
    %1154 = vmatpush1.msra.mxu0 0.0
    %1155 = vmatprep.subr.mxu0 0.0
    %1156 = vmatpush1.msra.mxu0 0.0
    %1157 = vmatprep.subr.mxu0 0.0
    %1158 = vmatpush1.msra.mxu0 0.0
    %1159 = vmatprep.subr.mxu0 0.0
    %1160 = vmatpush1.msra.mxu0 0.0
    %1161 = vmatprep.subr.mxu0 0.0
    %1162 = vmatpush1.msra.mxu0 0.0
    %1163 = vmatprep.subr.mxu0 0.0
    %1164 = vmatpush1.msra.mxu0 0.0
    %1165 = vmatprep.subr.mxu0 0.0
    %1166 = vmatpush1.msra.mxu0 0.0
    %1167 = vmatprep.subr.mxu0 0.0
    %1168 = vmatpush1.msra.mxu0 0.0
    %1169 = vmatprep.subr.mxu0 0.0
    %1170 = vmatpush1.msra.mxu0 0.0
    %1171 = vmatprep.subr.mxu0 0.0
    %1172 = vmatpush1.msra.mxu0 0.0
    %1173 = vmatprep.subr.mxu0 0.0
    %1174 = vmatpush1.msra.mxu0 0.0
    %1175 = vmatprep.subr.mxu0 0.0
    %1176 = vmatpush1.msra.mxu0 0.0
    %1177 = vmatprep.subr.mxu0 0.0
    %1178 = vmatpush1.msra.mxu0 0.0
    %1179 = vmatprep.subr.mxu0 0.0
    %1180 = vmatpush1.msra.mxu0 0.0
    %1181 = vmatprep.subr.mxu0 0.0
    %1182 = vmatpush1.msra.mxu0 0.0
    %1183 = vmatprep.subr.mxu0 0.0
    %1184 = vmatpush1.msra.mxu0 0.0
    %1185 = vmatprep.mubr.f32.mxu0 0.0
    %v1186 = vand.u32 %v678, 4294901760
    %1187 = vmatmul.mubr.f32.gmra.mrb[0].mxu0 %v1186
    %v1188 = vpop.f32.mrb[0].mxu0
    %v1189 = vadd.f32 %v1082, %v1188
    %v1190 = vpop.f32.mrb[0].mxu0
    %1191 = vmatprep.mubr.f32.mxu0 0.0
    %v1192 = vand.u32 %v681, 4294901760
    %1193 = vmatmul.mubr.f32.gmra.mrb[0].mxu0 %v1192
    %v1194 = vpop.f32.mrb[0].mxu0
    %v1195 = vadd.f32 %v1090, %v1194
    %v1196 = vpop.f32.mrb[0].mxu0
    %1197 = vmatprep.mubr.f32.mxu0 0.0
    %v1198 = vand.u32 %v684, 4294901760
    %1199 = vmatmul.mubr.f32.gmra.mrb[0].mxu0 %v1198
    %v1200 = vpop.f32.mrb[0].mxu0
    %v1201 = vadd.f32 %v1098, %v1200
    %v1202 = vpop.f32.mrb[0].mxu0
    %1203 = vmatprep.mubr.f32.mxu0 0.0
    %v1204 = vand.u32 %v687, 4294901760
    %1205 = vmatmul.mubr.f32.gmra.mrb[0].mxu0 %v1204
    %v1206 = vpop.f32.mrb[0].mxu0
    %v1207 = vadd.f32 %v1106, %v1206
    %v1208 = vpop.f32.mrb[0].mxu0
    %1209 = vdwg.mxu0
    %1210 = vmatprep.subr.mxu0 0.0
    %v1211 = vand.u32 %v644, 4294901760
    %1212 = vmatpush1.msra.mxu0 %v1211
    %1213 = vmatprep.subr.mxu0 0.0
    %v1214 = vand.u32 %v645, 4294901760
    %1215 = vmatpush1.msra.mxu0 %v1214
    %1216 = vmatprep.subr.mxu0 0.0
    %v1217 = vand.u32 %v646, 4294901760
    %1218 = vmatpush1.msra.mxu0 %v1217
    %1219 = vmatprep.subr.mxu0 0.0
    %v1220 = vand.u32 %v647, 4294901760
    %1221 = vmatpush1.msra.mxu0 %v1220
    %1222 = vmatprep.subr.mxu0 0.0
    %1223 = vmatpush1.msra.mxu0 0.0
    %1224 = vmatprep.subr.mxu0 0.0
    %1225 = vmatpush1.msra.mxu0 0.0
    %1226 = vmatprep.subr.mxu0 0.0
    %1227 = vmatpush1.msra.mxu0 0.0
    %1228 = vmatprep.subr.mxu0 0.0
    %1229 = vmatpush1.msra.mxu0 0.0
    %1230 = vmatprep.subr.mxu0 0.0
    %1231 = vmatpush1.msra.mxu0 0.0
    %1232 = vmatprep.subr.mxu0 0.0
    %1233 = vmatpush1.msra.mxu0 0.0
    %1234 = vmatprep.subr.mxu0 0.0
    %1235 = vmatpush1.msra.mxu0 0.0
    %1236 = vmatprep.subr.mxu0 0.0
    %1237 = vmatpush1.msra.mxu0 0.0
    %1238 = vmatprep.subr.mxu0 0.0
    %1239 = vmatpush1.msra.mxu0 0.0
    %1240 = vmatprep.subr.mxu0 0.0
    %1241 = vmatpush1.msra.mxu0 0.0
    %1242 = vmatprep.subr.mxu0 0.0
    %1243 = vmatpush1.msra.mxu0 0.0
    %1244 = vmatprep.subr.mxu0 0.0
    %1245 = vmatpush1.msra.mxu0 0.0
    %1246 = vmatprep.subr.mxu0 0.0
    %1247 = vmatpush1.msra.mxu0 0.0
    %1248 = vmatprep.subr.mxu0 0.0
    %1249 = vmatpush1.msra.mxu0 0.0
    %1250 = vmatprep.subr.mxu0 0.0
    %1251 = vmatpush1.msra.mxu0 0.0
    %1252 = vmatprep.subr.mxu0 0.0
    %1253 = vmatpush1.msra.mxu0 0.0
    %1254 = vmatprep.subr.mxu0 0.0
    %1255 = vmatpush1.msra.mxu0 0.0
    %1256 = vmatprep.subr.mxu0 0.0
    %1257 = vmatpush1.msra.mxu0 0.0
    %1258 = vmatprep.subr.mxu0 0.0
    %1259 = vmatpush1.msra.mxu0 0.0
    %1260 = vmatprep.subr.mxu0 0.0
    %1261 = vmatpush1.msra.mxu0 0.0
    %1262 = vmatprep.subr.mxu0 0.0
    %1263 = vmatpush1.msra.mxu0 0.0
    %1264 = vmatprep.subr.mxu0 0.0
    %1265 = vmatpush1.msra.mxu0 0.0
    %1266 = vmatprep.subr.mxu0 0.0
    %1267 = vmatpush1.msra.mxu0 0.0
    %1268 = vmatprep.subr.mxu0 0.0
    %1269 = vmatpush1.msra.mxu0 0.0
    %1270 = vmatprep.subr.mxu0 0.0
    %1271 = vmatpush1.msra.mxu0 0.0
    %1272 = vmatprep.subr.mxu0 0.0
    %1273 = vmatpush1.msra.mxu0 0.0
    %1274 = vmatprep.subr.mxu0 0.0
    %1275 = vmatpush1.msra.mxu0 0.0
    %1276 = vmatprep.subr.mxu0 0.0
    %1277 = vmatpush1.msra.mxu0 0.0
    %1278 = vmatprep.mubr.f32.mxu0 0.0
    %v1279 = vand.u32 %v678, 4294901760
    %1280 = vmatmul.mubr.f32.gmra.mrb[0].mxu0 %v1279
    %v1281 = vpop.f32.mrb[0].mxu0
    %v1282 = vadd.f32 %v1189, %v1281
    %v1283 = vpop.f32.mrb[0].mxu0
    %1284 = vmatprep.mubr.f32.mxu0 0.0
    %v1285 = vand.u32 %v681, 4294901760
    %1286 = vmatmul.mubr.f32.gmra.mrb[0].mxu0 %v1285
    %v1287 = vpop.f32.mrb[0].mxu0
    %v1288 = vadd.f32 %v1195, %v1287
    %v1289 = vpop.f32.mrb[0].mxu0
    %1290 = vmatprep.mubr.f32.mxu0 0.0
    %v1291 = vand.u32 %v684, 4294901760
    %1292 = vmatmul.mubr.f32.gmra.mrb[0].mxu0 %v1291
    %v1293 = vpop.f32.mrb[0].mxu0
    %v1294 = vadd.f32 %v1201, %v1293
    %v1295 = vpop.f32.mrb[0].mxu0
    %1296 = vmatprep.mubr.f32.mxu0 0.0
    %v1297 = vand.u32 %v687, 4294901760
    %1298 = vmatmul.mubr.f32.gmra.mrb[0].mxu0 %v1297
    %v1299 = vpop.f32.mrb[0].mxu0
    %v1300 = vadd.f32 %v1207, %v1299
    %v1301 = vpop.f32.mrb[0].mxu0
    %1302 = vdwg.mxu0
    %v1303 = vmax.f32 %v1282, 0.0
    %v1304 = vmax.f32 %v1288, 0.0
    %v1305 = vmax.f32 %v1294, 0.0
    %v1306 = vmax.f32 %v1300, 0.0
    %v1307 = vld [vmem:[%s5] sm:$0xff]
    %v1308 = vld [vmem:[%s6] sm:$0xff]
    %1310 = vset.pattern.permute.xlu0 0
    %1311 = vperm.xlu0 %1310, %v1308
    %v1312 = vpop.permute.xlu0 %1311
    %v1315 = vsel %vm676, %v1307, 0
    %1317 = vmatprep.subr.mxu0 0.0
    %v1318 = vand.u32 %v1303, 4294901760
    %1319 = vmatpush1.msra.mxu0 %v1318
    %1320 = vmatprep.subr.mxu0 0.0
    %v1321 = vand.u32 %v1304, 4294901760
    %1322 = vmatpush1.msra.mxu0 %v1321
    %1323 = vmatprep.subr.mxu0 0.0
    %v1324 = vand.u32 %v1305, 4294901760
    %1325 = vmatpush1.msra.mxu0 %v1324
    %1326 = vmatprep.subr.mxu0 0.0
    %v1327 = vand.u32 %v1306, 4294901760
    %1328 = vmatpush1.msra.mxu0 %v1327
    %1329 = vmatprep.subr.mxu0 0.0
    %1330 = vmatpush1.msra.mxu0 0.0
    %1331 = vmatprep.subr.mxu0 0.0
    %1332 = vmatpush1.msra.mxu0 0.0
    %1333 = vmatprep.subr.mxu0 0.0
    %1334 = vmatpush1.msra.mxu0 0.0
    %1335 = vmatprep.subr.mxu0 0.0
    %1336 = vmatpush1.msra.mxu0 0.0
    %1337 = vmatprep.subr.mxu0 0.0
    %1338 = vmatpush1.msra.mxu0 0.0
    %1339 = vmatprep.subr.mxu0 0.0
    %1340 = vmatpush1.msra.mxu0 0.0
    %1341 = vmatprep.subr.mxu0 0.0
    %1342 = vmatpush1.msra.mxu0 0.0
    %1343 = vmatprep.subr.mxu0 0.0
    %1344 = vmatpush1.msra.mxu0 0.0
    %1345 = vmatprep.subr.mxu0 0.0
    %1346 = vmatpush1.msra.mxu0 0.0
    %1347 = vmatprep.subr.mxu0 0.0
    %1348 = vmatpush1.msra.mxu0 0.0
    %1349 = vmatprep.subr.mxu0 0.0
    %1350 = vmatpush1.msra.mxu0 0.0
    %1351 = vmatprep.subr.mxu0 0.0
    %1352 = vmatpush1.msra.mxu0 0.0
    %1353 = vmatprep.subr.mxu0 0.0
    %1354 = vmatpush1.msra.mxu0 0.0
    %1355 = vmatprep.subr.mxu0 0.0
    %1356 = vmatpush1.msra.mxu0 0.0
    %1357 = vmatprep.subr.mxu0 0.0
    %1358 = vmatpush1.msra.mxu0 0.0
    %1359 = vmatprep.subr.mxu0 0.0
    %1360 = vmatpush1.msra.mxu0 0.0
    %1361 = vmatprep.subr.mxu0 0.0
    %1362 = vmatpush1.msra.mxu0 0.0
    %1363 = vmatprep.subr.mxu0 0.0
    %1364 = vmatpush1.msra.mxu0 0.0
    %1365 = vmatprep.subr.mxu0 0.0
    %1366 = vmatpush1.msra.mxu0 0.0
    %1367 = vmatprep.subr.mxu0 0.0
    %1368 = vmatpush1.msra.mxu0 0.0
    %1369 = vmatprep.subr.mxu0 0.0
    %1370 = vmatpush1.msra.mxu0 0.0
    %1371 = vmatprep.subr.mxu0 0.0
    %1372 = vmatpush1.msra.mxu0 0.0
    %1373 = vmatprep.subr.mxu0 0.0
    %1374 = vmatpush1.msra.mxu0 0.0
    %1375 = vmatprep.subr.mxu0 0.0
    %1376 = vmatpush1.msra.mxu0 0.0
    %1377 = vmatprep.subr.mxu0 0.0
    %1378 = vmatpush1.msra.mxu0 0.0
    %1379 = vmatprep.subr.mxu0 0.0
    %1380 = vmatpush1.msra.mxu0 0.0
    %1381 = vmatprep.subr.mxu0 0.0
    %1382 = vmatpush1.msra.mxu0 0.0
    %1383 = vmatprep.subr.mxu0 0.0
    %1384 = vmatpush1.msra.mxu0 0.0
    %1385 = vmatprep.mubr.f32.mxu0 0.0
    %v1386 = vand.u32 %v1315, 4294901760
    %v1387 = vsub.f32 %v1315, %v1386
    %v1388 = vand.u32 %v1387, 4294901760
    %v1389 = vsub.f32 %v1387, %v1388
    %v1390 = vand.u32 %v1389, 4294901760
    %1391 = vmatmul.mubr.f32.gmra.mrb[0].mxu0 %v1390
    %v1392 = vpop.f32.mrb[0].mxu0
    %v1393 = vadd.f32 %v1312, %v1392
    %v1394 = vpop.f32.mrb[0].mxu0
    %1395 = vdwg.mxu0
    %1396 = vmatprep.subr.mxu0 0.0
    %v1397 = vand.u32 %v1303, 4294901760
    %v1398 = vsub.f32 %v1303, %v1397
    %v1399 = vand.u32 %v1398, 4294901760
    %v1400 = vsub.f32 %v1398, %v1399
    %v1401 = vand.u32 %v1400, 4294901760
    %1402 = vmatpush1.msra.mxu0 %v1401
    %1403 = vmatprep.subr.mxu0 0.0
    %v1404 = vand.u32 %v1304, 4294901760
    %v1405 = vsub.f32 %v1304, %v1404
    %v1406 = vand.u32 %v1405, 4294901760
    %v1407 = vsub.f32 %v1405, %v1406
    %v1408 = vand.u32 %v1407, 4294901760
    %1409 = vmatpush1.msra.mxu0 %v1408
    %1410 = vmatprep.subr.mxu0 0.0
    %v1411 = vand.u32 %v1305, 4294901760
    %v1412 = vsub.f32 %v1305, %v1411
    %v1413 = vand.u32 %v1412, 4294901760
    %v1414 = vsub.f32 %v1412, %v1413
    %v1415 = vand.u32 %v1414, 4294901760
    %1416 = vmatpush1.msra.mxu0 %v1415
    %1417 = vmatprep.subr.mxu0 0.0
    %v1418 = vand.u32 %v1306, 4294901760
    %v1419 = vsub.f32 %v1306, %v1418
    %v1420 = vand.u32 %v1419, 4294901760
    %v1421 = vsub.f32 %v1419, %v1420
    %v1422 = vand.u32 %v1421, 4294901760
    %1423 = vmatpush1.msra.mxu0 %v1422
    %1424 = vmatprep.subr.mxu0 0.0
    %1425 = vmatpush1.msra.mxu0 0.0
    %1426 = vmatprep.subr.mxu0 0.0
    %1427 = vmatpush1.msra.mxu0 0.0
    %1428 = vmatprep.subr.mxu0 0.0
    %1429 = vmatpush1.msra.mxu0 0.0
    %1430 = vmatprep.subr.mxu0 0.0
    %1431 = vmatpush1.msra.mxu0 0.0
    %1432 = vmatprep.subr.mxu0 0.0
    %1433 = vmatpush1.msra.mxu0 0.0
    %1434 = vmatprep.subr.mxu0 0.0
    %1435 = vmatpush1.msra.mxu0 0.0
    %1436 = vmatprep.subr.mxu0 0.0
    %1437 = vmatpush1.msra.mxu0 0.0
    %1438 = vmatprep.subr.mxu0 0.0
    %1439 = vmatpush1.msra.mxu0 0.0
    %1440 = vmatprep.subr.mxu0 0.0
    %1441 = vmatpush1.msra.mxu0 0.0
    %1442 = vmatprep.subr.mxu0 0.0
    %1443 = vmatpush1.msra.mxu0 0.0
    %1444 = vmatprep.subr.mxu0 0.0
    %1445 = vmatpush1.msra.mxu0 0.0
    %1446 = vmatprep.subr.mxu0 0.0
    %1447 = vmatpush1.msra.mxu0 0.0
    %1448 = vmatprep.subr.mxu0 0.0
    %1449 = vmatpush1.msra.mxu0 0.0
    %1450 = vmatprep.subr.mxu0 0.0
    %1451 = vmatpush1.msra.mxu0 0.0
    %1452 = vmatprep.subr.mxu0 0.0
    %1453 = vmatpush1.msra.mxu0 0.0
    %1454 = vmatprep.subr.mxu0 0.0
    %1455 = vmatpush1.msra.mxu0 0.0
    %1456 = vmatprep.subr.mxu0 0.0
    %1457 = vmatpush1.msra.mxu0 0.0
    %1458 = vmatprep.subr.mxu0 0.0
    %1459 = vmatpush1.msra.mxu0 0.0
    %1460 = vmatprep.subr.mxu0 0.0
    %1461 = vmatpush1.msra.mxu0 0.0
    %1462 = vmatprep.subr.mxu0 0.0
    %1463 = vmatpush1.msra.mxu0 0.0
    %1464 = vmatprep.subr.mxu0 0.0
    %1465 = vmatpush1.msra.mxu0 0.0
    %1466 = vmatprep.subr.mxu0 0.0
    %1467 = vmatpush1.msra.mxu0 0.0
    %1468 = vmatprep.subr.mxu0 0.0
    %1469 = vmatpush1.msra.mxu0 0.0
    %1470 = vmatprep.subr.mxu0 0.0
    %1471 = vmatpush1.msra.mxu0 0.0
    %1472 = vmatprep.subr.mxu0 0.0
    %1473 = vmatpush1.msra.mxu0 0.0
    %1474 = vmatprep.subr.mxu0 0.0
    %1475 = vmatpush1.msra.mxu0 0.0
    %1476 = vmatprep.subr.mxu0 0.0
    %1477 = vmatpush1.msra.mxu0 0.0
    %1478 = vmatprep.subr.mxu0 0.0
    %1479 = vmatpush1.msra.mxu0 0.0
    %1480 = vmatprep.mubr.f32.mxu0 0.0
    %v1481 = vand.u32 %v1315, 4294901760
    %1482 = vmatmul.mubr.f32.gmra.mrb[0].mxu0 %v1481
    %v1483 = vpop.f32.mrb[0].mxu0
    %v1484 = vadd.f32 %v1393, %v1483
    %v1485 = vpop.f32.mrb[0].mxu0
    %1486 = vdwg.mxu0
    %1487 = vmatprep.subr.mxu0 0.0
    %v1488 = vand.u32 %v1303, 4294901760
    %v1489 = vsub.f32 %v1303, %v1488
    %1490 = vmatpush1.msra.mxu0 %v1489
    %1491 = vmatprep.subr.mxu0 0.0
    %v1492 = vand.u32 %v1304, 4294901760
    %v1493 = vsub.f32 %v1304, %v1492
    %1494 = vmatpush1.msra.mxu0 %v1493
    %1495 = vmatprep.subr.mxu0 0.0
    %v1496 = vand.u32 %v1305, 4294901760
    %v1497 = vsub.f32 %v1305, %v1496
    %1498 = vmatpush1.msra.mxu0 %v1497
    %1499 = vmatprep.subr.mxu0 0.0
    %v1500 = vand.u32 %v1306, 4294901760
    %v1501 = vsub.f32 %v1306, %v1500
    %1502 = vmatpush1.msra.mxu0 %v1501
    %1503 = vmatprep.subr.mxu0 0.0
    %1504 = vmatpush1.msra.mxu0 0.0
    %1505 = vmatprep.subr.mxu0 0.0
    %1506 = vmatpush1.msra.mxu0 0.0
    %1507 = vmatprep.subr.mxu0 0.0
    %1508 = vmatpush1.msra.mxu0 0.0
    %1509 = vmatprep.subr.mxu0 0.0
    %1510 = vmatpush1.msra.mxu0 0.0
    %1511 = vmatprep.subr.mxu0 0.0
    %1512 = vmatpush1.msra.mxu0 0.0
    %1513 = vmatprep.subr.mxu0 0.0
    %1514 = vmatpush1.msra.mxu0 0.0
    %1515 = vmatprep.subr.mxu0 0.0
    %1516 = vmatpush1.msra.mxu0 0.0
    %1517 = vmatprep.subr.mxu0 0.0
    %1518 = vmatpush1.msra.mxu0 0.0
    %1519 = vmatprep.subr.mxu0 0.0
    %1520 = vmatpush1.msra.mxu0 0.0
    %1521 = vmatprep.subr.mxu0 0.0
    %1522 = vmatpush1.msra.mxu0 0.0
    %1523 = vmatprep.subr.mxu0 0.0
    %1524 = vmatpush1.msra.mxu0 0.0
    %1525 = vmatprep.subr.mxu0 0.0
    %1526 = vmatpush1.msra.mxu0 0.0
    %1527 = vmatprep.subr.mxu0 0.0
    %1528 = vmatpush1.msra.mxu0 0.0
    %1529 = vmatprep.subr.mxu0 0.0
    %1530 = vmatpush1.msra.mxu0 0.0
    %1531 = vmatprep.subr.mxu0 0.0
    %1532 = vmatpush1.msra.mxu0 0.0
    %1533 = vmatprep.subr.mxu0 0.0
    %1534 = vmatpush1.msra.mxu0 0.0
    %1535 = vmatprep.subr.mxu0 0.0
    %1536 = vmatpush1.msra.mxu0 0.0
    %1537 = vmatprep.subr.mxu0 0.0
    %1538 = vmatpush1.msra.mxu0 0.0
    %1539 = vmatprep.subr.mxu0 0.0
    %1540 = vmatpush1.msra.mxu0 0.0
    %1541 = vmatprep.subr.mxu0 0.0
    %1542 = vmatpush1.msra.mxu0 0.0
    %1543 = vmatprep.subr.mxu0 0.0
    %1544 = vmatpush1.msra.mxu0 0.0
    %1545 = vmatprep.subr.mxu0 0.0
    %1546 = vmatpush1.msra.mxu0 0.0
    %1547 = vmatprep.subr.mxu0 0.0
    %1548 = vmatpush1.msra.mxu0 0.0
    %1549 = vmatprep.subr.mxu0 0.0
    %1550 = vmatpush1.msra.mxu0 0.0
    %1551 = vmatprep.subr.mxu0 0.0
    %1552 = vmatpush1.msra.mxu0 0.0
    %1553 = vmatprep.subr.mxu0 0.0
    %1554 = vmatpush1.msra.mxu0 0.0
    %1555 = vmatprep.subr.mxu0 0.0
    %1556 = vmatpush1.msra.mxu0 0.0
    %1557 = vmatprep.subr.mxu0 0.0
    %1558 = vmatpush1.msra.mxu0 0.0
    %1559 = vmatprep.mubr.f32.mxu0 0.0
    %v1560 = vand.u32 %v1315, 4294901760
    %v1561 = vsub.f32 %v1315, %v1560
    %1562 = vmatmul.mubr.f32.gmra.mrb[0].mxu0 %v1561
    %v1563 = vpop.f32.mrb[0].mxu0
    %v1564 = vadd.f32 %v1484, %v1563
    %v1565 = vpop.f32.mrb[0].mxu0
    %1566 = vdwg.mxu0
    %1567 = vmatprep.subr.mxu0 0.0
    %v1568 = vand.u32 %v1303, 4294901760
    %1569 = vmatpush1.msra.mxu0 %v1568
    %1570 = vmatprep.subr.mxu0 0.0
    %v1571 = vand.u32 %v1304, 4294901760
    %1572 = vmatpush1.msra.mxu0 %v1571
    %1573 = vmatprep.subr.mxu0 0.0
    %v1574 = vand.u32 %v1305, 4294901760
    %1575 = vmatpush1.msra.mxu0 %v1574
    %1576 = vmatprep.subr.mxu0 0.0
    %v1577 = vand.u32 %v1306, 4294901760
    %1578 = vmatpush1.msra.mxu0 %v1577
    %1579 = vmatprep.subr.mxu0 0.0
    %1580 = vmatpush1.msra.mxu0 0.0
    %1581 = vmatprep.subr.mxu0 0.0
    %1582 = vmatpush1.msra.mxu0 0.0
    %1583 = vmatprep.subr.mxu0 0.0
    %1584 = vmatpush1.msra.mxu0 0.0
    %1585 = vmatprep.subr.mxu0 0.0
    %1586 = vmatpush1.msra.mxu0 0.0
    %1587 = vmatprep.subr.mxu0 0.0
    %1588 = vmatpush1.msra.mxu0 0.0
    %1589 = vmatprep.subr.mxu0 0.0
    %1590 = vmatpush1.msra.mxu0 0.0
    %1591 = vmatprep.subr.mxu0 0.0
    %1592 = vmatpush1.msra.mxu0 0.0
    %1593 = vmatprep.subr.mxu0 0.0
    %1594 = vmatpush1.msra.mxu0 0.0
    %1595 = vmatprep.subr.mxu0 0.0
    %1596 = vmatpush1.msra.mxu0 0.0
    %1597 = vmatprep.subr.mxu0 0.0
    %1598 = vmatpush1.msra.mxu0 0.0
    %1599 = vmatprep.subr.mxu0 0.0
    %1600 = vmatpush1.msra.mxu0 0.0
    %1601 = vmatprep.subr.mxu0 0.0
    %1602 = vmatpush1.msra.mxu0 0.0
    %1603 = vmatprep.subr.mxu0 0.0
    %1604 = vmatpush1.msra.mxu0 0.0
    %1605 = vmatprep.subr.mxu0 0.0
    %1606 = vmatpush1.msra.mxu0 0.0
    %1607 = vmatprep.subr.mxu0 0.0
    %1608 = vmatpush1.msra.mxu0 0.0
    %1609 = vmatprep.subr.mxu0 0.0
    %1610 = vmatpush1.msra.mxu0 0.0
    %1611 = vmatprep.subr.mxu0 0.0
    %1612 = vmatpush1.msra.mxu0 0.0
    %1613 = vmatprep.subr.mxu0 0.0
    %1614 = vmatpush1.msra.mxu0 0.0
    %1615 = vmatprep.subr.mxu0 0.0
    %1616 = vmatpush1.msra.mxu0 0.0
    %1617 = vmatprep.subr.mxu0 0.0
    %1618 = vmatpush1.msra.mxu0 0.0
    %1619 = vmatprep.subr.mxu0 0.0
    %1620 = vmatpush1.msra.mxu0 0.0
    %1621 = vmatprep.subr.mxu0 0.0
    %1622 = vmatpush1.msra.mxu0 0.0
    %1623 = vmatprep.subr.mxu0 0.0
    %1624 = vmatpush1.msra.mxu0 0.0
    %1625 = vmatprep.subr.mxu0 0.0
    %1626 = vmatpush1.msra.mxu0 0.0
    %1627 = vmatprep.subr.mxu0 0.0
    %1628 = vmatpush1.msra.mxu0 0.0
    %1629 = vmatprep.subr.mxu0 0.0
    %1630 = vmatpush1.msra.mxu0 0.0
    %1631 = vmatprep.subr.mxu0 0.0
    %1632 = vmatpush1.msra.mxu0 0.0
    %1633 = vmatprep.subr.mxu0 0.0
    %1634 = vmatpush1.msra.mxu0 0.0
    %1635 = vmatprep.mubr.f32.mxu0 0.0
    %v1636 = vand.u32 %v1315, 4294901760
    %v1637 = vsub.f32 %v1315, %v1636
    %v1638 = vand.u32 %v1637, 4294901760
    %1639 = vmatmul.mubr.f32.gmra.mrb[0].mxu0 %v1638
    %v1640 = vpop.f32.mrb[0].mxu0
    %v1641 = vadd.f32 %v1564, %v1640
    %v1642 = vpop.f32.mrb[0].mxu0
    %1643 = vdwg.mxu0
    %1644 = vmatprep.subr.mxu0 0.0
    %v1645 = vand.u32 %v1303, 4294901760
    %v1646 = vsub.f32 %v1303, %v1645
    %v1647 = vand.u32 %v1646, 4294901760
    %1648 = vmatpush1.msra.mxu0 %v1647
    %1649 = vmatprep.subr.mxu0 0.0
    %v1650 = vand.u32 %v1304, 4294901760
    %v1651 = vsub.f32 %v1304, %v1650
    %v1652 = vand.u32 %v1651, 4294901760
    %1653 = vmatpush1.msra.mxu0 %v1652
    %1654 = vmatprep.subr.mxu0 0.0
    %v1655 = vand.u32 %v1305, 4294901760
    %v1656 = vsub.f32 %v1305, %v1655
    %v1657 = vand.u32 %v1656, 4294901760
    %1658 = vmatpush1.msra.mxu0 %v1657
    %1659 = vmatprep.subr.mxu0 0.0
    %v1660 = vand.u32 %v1306, 4294901760
    %v1661 = vsub.f32 %v1306, %v1660
    %v1662 = vand.u32 %v1661, 4294901760
    %1663 = vmatpush1.msra.mxu0 %v1662
    %1664 = vmatprep.subr.mxu0 0.0
    %1665 = vmatpush1.msra.mxu0 0.0
    %1666 = vmatprep.subr.mxu0 0.0
    %1667 = vmatpush1.msra.mxu0 0.0
    %1668 = vmatprep.subr.mxu0 0.0
    %1669 = vmatpush1.msra.mxu0 0.0
    %1670 = vmatprep.subr.mxu0 0.0
    %1671 = vmatpush1.msra.mxu0 0.0
    %1672 = vmatprep.subr.mxu0 0.0
    %1673 = vmatpush1.msra.mxu0 0.0
    %1674 = vmatprep.subr.mxu0 0.0
    %1675 = vmatpush1.msra.mxu0 0.0
    %1676 = vmatprep.subr.mxu0 0.0
    %1677 = vmatpush1.msra.mxu0 0.0
    %1678 = vmatprep.subr.mxu0 0.0
    %1679 = vmatpush1.msra.mxu0 0.0
    %1680 = vmatprep.subr.mxu0 0.0
    %1681 = vmatpush1.msra.mxu0 0.0
    %1682 = vmatprep.subr.mxu0 0.0
    %1683 = vmatpush1.msra.mxu0 0.0
    %1684 = vmatprep.subr.mxu0 0.0
    %1685 = vmatpush1.msra.mxu0 0.0
    %1686 = vmatprep.subr.mxu0 0.0
    %1687 = vmatpush1.msra.mxu0 0.0
    %1688 = vmatprep.subr.mxu0 0.0
    %1689 = vmatpush1.msra.mxu0 0.0
    %1690 = vmatprep.subr.mxu0 0.0
    %1691 = vmatpush1.msra.mxu0 0.0
    %1692 = vmatprep.subr.mxu0 0.0
    %1693 = vmatpush1.msra.mxu0 0.0
    %1694 = vmatprep.subr.mxu0 0.0
    %1695 = vmatpush1.msra.mxu0 0.0
    %1696 = vmatprep.subr.mxu0 0.0
    %1697 = vmatpush1.msra.mxu0 0.0
    %1698 = vmatprep.subr.mxu0 0.0
    %1699 = vmatpush1.msra.mxu0 0.0
    %1700 = vmatprep.subr.mxu0 0.0
    %1701 = vmatpush1.msra.mxu0 0.0
    %1702 = vmatprep.subr.mxu0 0.0
    %1703 = vmatpush1.msra.mxu0 0.0
    %1704 = vmatprep.subr.mxu0 0.0
    %1705 = vmatpush1.msra.mxu0 0.0
    %1706 = vmatprep.subr.mxu0 0.0
    %1707 = vmatpush1.msra.mxu0 0.0
    %1708 = vmatprep.subr.mxu0 0.0
    %1709 = vmatpush1.msra.mxu0 0.0
    %1710 = vmatprep.subr.mxu0 0.0
    %1711 = vmatpush1.msra.mxu0 0.0
    %1712 = vmatprep.subr.mxu0 0.0
    %1713 = vmatpush1.msra.mxu0 0.0
    %1714 = vmatprep.subr.mxu0 0.0
    %1715 = vmatpush1.msra.mxu0 0.0
    %1716 = vmatprep.subr.mxu0 0.0
    %1717 = vmatpush1.msra.mxu0 0.0
    %1718 = vmatprep.subr.mxu0 0.0
    %1719 = vmatpush1.msra.mxu0 0.0
    %1720 = vmatprep.mubr.f32.mxu0 0.0
    %v1721 = vand.u32 %v1315, 4294901760
    %1722 = vmatmul.mubr.f32.gmra.mrb[0].mxu0 %v1721
    %v1723 = vpop.f32.mrb[0].mxu0
    %v1724 = vadd.f32 %v1641, %v1723
    %v1725 = vpop.f32.mrb[0].mxu0
    %1726 = vdwg.mxu0
    %1727 = vmatprep.subr.mxu0 0.0
    %v1728 = vand.u32 %v1303, 4294901760
    %1729 = vmatpush1.msra.mxu0 %v1728
    %1730 = vmatprep.subr.mxu0 0.0
    %v1731 = vand.u32 %v1304, 4294901760
    %1732 = vmatpush1.msra.mxu0 %v1731
    %1733 = vmatprep.subr.mxu0 0.0
    %v1734 = vand.u32 %v1305, 4294901760
    %1735 = vmatpush1.msra.mxu0 %v1734
    %1736 = vmatprep.subr.mxu0 0.0
    %v1737 = vand.u32 %v1306, 4294901760
    %1738 = vmatpush1.msra.mxu0 %v1737
    %1739 = vmatprep.subr.mxu0 0.0
    %1740 = vmatpush1.msra.mxu0 0.0
    %1741 = vmatprep.subr.mxu0 0.0
    %1742 = vmatpush1.msra.mxu0 0.0
    %1743 = vmatprep.subr.mxu0 0.0
    %1744 = vmatpush1.msra.mxu0 0.0
    %1745 = vmatprep.subr.mxu0 0.0
    %1746 = vmatpush1.msra.mxu0 0.0
    %1747 = vmatprep.subr.mxu0 0.0
    %1748 = vmatpush1.msra.mxu0 0.0
    %1749 = vmatprep.subr.mxu0 0.0
    %1750 = vmatpush1.msra.mxu0 0.0
    %1751 = vmatprep.subr.mxu0 0.0
    %1752 = vmatpush1.msra.mxu0 0.0
    %1753 = vmatprep.subr.mxu0 0.0
    %1754 = vmatpush1.msra.mxu0 0.0
    %1755 = vmatprep.subr.mxu0 0.0
    %1756 = vmatpush1.msra.mxu0 0.0
    %1757 = vmatprep.subr.mxu0 0.0
    %1758 = vmatpush1.msra.mxu0 0.0
    %1759 = vmatprep.subr.mxu0 0.0
    %1760 = vmatpush1.msra.mxu0 0.0
    %1761 = vmatprep.subr.mxu0 0.0
    %1762 = vmatpush1.msra.mxu0 0.0
    %1763 = vmatprep.subr.mxu0 0.0
    %1764 = vmatpush1.msra.mxu0 0.0
    %1765 = vmatprep.subr.mxu0 0.0
    %1766 = vmatpush1.msra.mxu0 0.0
    %1767 = vmatprep.subr.mxu0 0.0
    %1768 = vmatpush1.msra.mxu0 0.0
    %1769 = vmatprep.subr.mxu0 0.0
    %1770 = vmatpush1.msra.mxu0 0.0
    %1771 = vmatprep.subr.mxu0 0.0
    %1772 = vmatpush1.msra.mxu0 0.0
    %1773 = vmatprep.subr.mxu0 0.0
    %1774 = vmatpush1.msra.mxu0 0.0
    %1775 = vmatprep.subr.mxu0 0.0
    %1776 = vmatpush1.msra.mxu0 0.0
    %1777 = vmatprep.subr.mxu0 0.0
    %1778 = vmatpush1.msra.mxu0 0.0
    %1779 = vmatprep.subr.mxu0 0.0
    %1780 = vmatpush1.msra.mxu0 0.0
    %1781 = vmatprep.subr.mxu0 0.0
    %1782 = vmatpush1.msra.mxu0 0.0
    %1783 = vmatprep.subr.mxu0 0.0
    %1784 = vmatpush1.msra.mxu0 0.0
    %1785 = vmatprep.subr.mxu0 0.0
    %1786 = vmatpush1.msra.mxu0 0.0
    %1787 = vmatprep.subr.mxu0 0.0
    %1788 = vmatpush1.msra.mxu0 0.0
    %1789 = vmatprep.subr.mxu0 0.0
    %1790 = vmatpush1.msra.mxu0 0.0
    %1791 = vmatprep.subr.mxu0 0.0
    %1792 = vmatpush1.msra.mxu0 0.0
    %1793 = vmatprep.subr.mxu0 0.0
    %1794 = vmatpush1.msra.mxu0 0.0
    %1795 = vmatprep.mubr.f32.mxu0 0.0
    %v1796 = vand.u32 %v1315, 4294901760
    %1797 = vmatmul.mubr.f32.gmra.mrb[0].mxu0 %v1796
    %v1798 = vpop.f32.mrb[0].mxu0
    %v1799 = vadd.f32 %v1724, %v1798
    %v1800 = vpop.f32.mrb[0].mxu0
    %1801 = vdwg.mxu0
    %v1802 = vtanh.pop %v1799
    %v1803 = vmul.f32 %v1802, 2.0
    %1804 = vst [vmem:[#allocation2] sm:$0xff] %v1803
    // Predicated region
    $region30: #{tpu_custom_call.1} parent=1 // pred_check
      _
    $region31: #{tpu_custom_call.1} parent=1 // pred_check_branch
      %1806 = sbr.rel (0) target = $region33
    $region32: #{tpu_custom_call.1} parent=1 // pred_region
      %s1808 = ssub.s32 128, 128
      %1809 = vsyncadd [#allocation3], %s1808
      %s1811 = sshll.u32 [#allocation2], 4
      %s1812 = int_to_ptr.vmem [resolvable:$true] %s1811
      %1814 = dma.vmem_to_hbm [thread:$0]  %s1812, 128, %s7, [#allocation3]
    $region33: #{tpu_custom_call.1} parent=1 // pred_fallthru
      _
    // Predicated region
    $region34: #{tpu_custom_call.1} parent=1 // pred_check
      _
    $region35: #{tpu_custom_call.1} parent=1 // pred_check_branch
      %1816 = sbr.rel (0) target = $region37
    $region36: #{tpu_custom_call.1} parent=1 // pred_region
      %1817 = dma.done [#allocation3], 128
    $region37: #{tpu_custom_call.1} parent=1 // pred_fallthru
      _
    %1818 = vsyncpa [#allocation3], 1

</llo_original>
